<compile_context>
chip_gen: v5e
topology: v5e:2x2
jax: 0.10.0
libtpu: 0.0.40
codegen_flags: <defaults>
</compile_context>

<pallas_src>
import math

import numpy as np
import jax
import jax.numpy as jnp
from jax.experimental import pallas as pl
from jax.experimental.pallas import tpu as pltpu


def _gelu_tanh(x):
    # TODO(synk): PyTorch nn.GELU() default is the exact erf form; the tanh
    # approximation (max abs diff ~1e-3) is used here to stay on supported
    # Pallas/TPU transcendentals. The in-script reference uses the same form.
    c = math.sqrt(2.0 / math.pi)
    return 0.5 * x * (1.0 + jnp.tanh(c * (x + 0.044715 * x * x * x)))


def _condnet_kernel(time_ref, freqs_ref, x_ref, h_ref, c0_ref, auth_ref,
                    wn1_ref, bn1_ref,
                    w1s_ref, w1c_ref, b1_ref, w2_ref, b2_ref,
                    wdx_ref, wdh_ref, wdt_ref, wdc_ref, bd_ref,
                    out_ref):
    f32 = jnp.float32

    # ---- fused step_mlp: sinusoidal embedding -> Linear -> GELU -> Linear ----
    args = time_ref[...] * freqs_ref[...]            # (tb, 1) * (1, half) -> (tb, half)
    sin_e = jnp.sin(args)
    cos_e = jnp.cos(args)
    # concat([sin, cos], -1) @ W1  ==  sin @ W1[:half] + cos @ W1[half:]
    h1 = (jnp.dot(sin_e, w1s_ref[...], preferred_element_type=f32)
          + jnp.dot(cos_e, w1c_ref[...], preferred_element_type=f32)
          + b1_ref[...])
    h1 = _gelu_tanh(h1)
    t_emb = jnp.dot(h1, w2_ref[...], preferred_element_type=f32) + b2_ref[...]

    # ---- content / authenticity gating (nn_1 + cosine-sim gate), row 0 only ----
    c_lin = jnp.dot(c0_ref[...], wn1_ref[...], preferred_element_type=f32) + bn1_ref[...]
    a_lin = jnp.dot(auth_ref[...], wn1_ref[...], preferred_element_type=f32) + bn1_ref[...]
    num = jnp.sum(c_lin * a_lin, axis=-1, keepdims=True)
    cn = jnp.sqrt(jnp.sum(c_lin * c_lin, axis=-1, keepdims=True))
    an = jnp.sqrt(jnp.sum(a_lin * a_lin, axis=-1, keepdims=True))
    cos_sim = num / jnp.maximum(cn * an, 1e-8)
    gate = 0.5 * (1.0 + jnp.tanh(cos_sim))           # (tb, 1)
    c_gated = c_lin * gate + a_lin * (1.0 - gate)

    # ---- diffuser: Linear(concat([x, h, t, c0], -1)) as 4 split matmuls ----
    out = (jnp.dot(x_ref[...], wdx_ref[...], preferred_element_type=f32)
           + jnp.dot(h_ref[...], wdh_ref[...], preferred_element_type=f32)
           + jnp.dot(t_emb, wdt_ref[...], preferred_element_type=f32)
           + jnp.dot(c_gated, wdc_ref[...], preferred_element_type=f32)
           + bd_ref[...])
    out_ref[...] = out.astype(out_ref.dtype)


def condition_net_forward(x, h, step, content, authenticity, params):
    """Pallas equivalent of ConditionNet.forward(...) on the diffuser (MLP) path.

    Args:
      x:            (B, 1, D)  -- squeezed inside, as in the PyTorch forward.
      h:            (B, D)
      step:         (B,)       -- diffusion timesteps.
      content:      (B, L, D)  -- only content[:, 0, :] feeds this path.
      authenticity: (B, D)
      params:       dict of weights, (in, out) layout (see init_params).
    Returns:
      (B, D) float32.
    """
    B = x.shape[0]
    D = params["w_nn1"].shape[0]
    assert D % 2 == 0 and D >= 4, "hidden_size must be even and > 2"
    half = D // 2
    f32 = jnp.float32

    x2 = x.reshape(B, D).astype(f32)                 # x.squeeze(1)
    h2 = h.astype(f32)
    c0 = content[:, 0, :].astype(f32)
    auth = authenticity.astype(f32)
    time2d = step.astype(f32).reshape(B, 1)

    # Static frequency table, hoisted out of the kernel body.
    freqs = jnp.asarray(
        np.exp(np.arange(half, dtype=np.float32)
               * -(math.log(10000.0) / (half - 1))).reshape(1, half))

    # Split weights so concat+Linear becomes plain MXU matmuls.
    w1s = params["w_mlp1"][:half, :]
    w1c = params["w_mlp1"][half:, :]
    wdx = params["w_diff"][0 * D:1 * D, :]
    wdh = params["w_diff"][1 * D:2 * D, :]
    wdt = params["w_diff"][2 * D:3 * D, :]
    wdc = params["w_diff"][3 * D:4 * D, :]
    b_nn1 = params["b_nn1"].reshape(1, D)
    b1 = params["b_mlp1"].reshape(1, 2 * D)
    b2 = params["b_mlp2"].reshape(1, D)
    bd = params["b_diff"].reshape(1, D)

    # Batch tiling: one block unless B is large enough to shard across cores.
    tb = 512 if (B >= 1024 and B % 512 == 0) else B
    grid = (B // tb,)

    def row_spec(cols):
        return pl.BlockSpec((tb, cols), lambda i: (i, 0), memory_space=pltpu.VMEM)

    def full_spec(shape):
        return pl.BlockSpec(shape, lambda i: (0,) * len(shape),
                            memory_space=pltpu.VMEM)

    in_specs = [
        row_spec(1),                     # time
        full_spec((1, half)),            # freqs (static)
        row_spec(D),                     # x
        row_spec(D),                     # h
        row_spec(D),                     # content[:, 0, :]
        row_spec(D),                     # authenticity
        full_spec((D, D)), full_spec((1, D)),                       # nn_1
        full_spec((half, 2 * D)), full_spec((half, 2 * D)),         # step_mlp L1 (sin/cos halves)
        full_spec((1, 2 * D)),
        full_spec((2 * D, D)), full_spec((1, D)),                   # step_mlp L2
        full_spec((D, D)), full_spec((D, D)),                       # diffuser splits
        full_spec((D, D)), full_spec((D, D)),
        full_spec((1, D)),                                          # diffuser bias
    ]

    return pl.pallas_call(
        _condnet_kernel,
        out_shape=jax.ShapeDtypeStruct((B, D), jnp.float32),
        grid=grid,
        in_specs=in_specs,
        out_specs=row_spec(D),
        compiler_params=pltpu.CompilerParams(dimension_semantics=("parallel",)),
    )(time2d, freqs, x2, h2, c0, auth,
      params["w_nn1"], b_nn1,
      w1s, w1c, b1, params["w_mlp2"], b2,
      wdx, wdh, wdt, wdc, bd)


def init_params(key, hidden=128):
    """Random ConditionNet weights (deterministic given key). (in, out) layout."""
    D = hidden
    ks = jax.random.split(key, 8)
    ws, bs = 0.05, 0.5
    return dict(
        w_nn1=jax.random.normal(ks[0], (D, D), jnp.float32) * ws,
        b_nn1=jax.random.normal(ks[1], (D,), jnp.float32) * bs,
        w_mlp1=jax.random.normal(ks[2], (D, 2 * D), jnp.float32) * ws,
        b_mlp1=jax.random.normal(ks[3], (2 * D,), jnp.float32) * bs,
        w_mlp2=jax.random.normal(ks[4], (2 * D, D), jnp.float32) * ws,
        b_mlp2=jax.random.normal(ks[5], (D,), jnp.float32) * bs,
        w_diff=jax.random.normal(ks[6], (4 * D, D), jnp.float32) * ws,  # [x|h|t|c0]
        b_diff=jax.random.normal(ks[7], (D,), jnp.float32) * bs,
    )


def _reference_forward(x, h, step, content, authenticity, params):
    """Pure-JAX reference mirroring the PyTorch diffuser path (eval mode)."""
    D = params["w_nn1"].shape[0]
    half = D // 2
    f32 = jnp.float32
    content = content.astype(f32)
    authenticity = authenticity.astype(f32)

    c_lin = content @ params["w_nn1"] + params["b_nn1"]             # (B, L, D)
    a_lin = authenticity @ params["w_nn1"] + params["b_nn1"]        # (B, D)
    num = jnp.sum(c_lin * a_lin[:, None, :], axis=-1)
    denom = jnp.maximum(jnp.linalg.norm(c_lin, axis=-1)
                        * jnp.linalg.norm(a_lin, axis=-1)[:, None], 1e-8)
    gate = 0.5 * (1.0 + jnp.tanh(num / denom))                      # (B, L)
    c_gated = c_lin * gate[..., None] + a_lin[:, None, :] * (1.0 - gate)[..., None]

    emb_scale = math.log(10000.0) / (half - 1)
    freqs = jnp.exp(jnp.arange(half, dtype=f32) * -emb_scale)
    se = step.astype(f32)[:, None] * freqs[None, :]
    temb = jnp.concatenate([jnp.sin(se), jnp.cos(se)], axis=-1)
    h1 = _gelu_tanh(temb @ params["w_mlp1"] + params["b_mlp1"])
    t = h1 @ params["w_mlp2"] + params["b_mlp2"]

    xs = x.reshape(x.shape[0], D).astype(f32)
    cat = jnp.concatenate([xs, h.astype(f32), t, c_gated[:, 0, :]], axis=1)
    return cat @ params["w_diff"] + params["b_diff"]


# TODO(synk): the 'clsattn'/'seqattn' attention fusion paths (MultiHeadAttention
# + LayerNorm residual stacks) are not ported; the 'clsattn' path as written in
# the PyTorch source also calls cross_attn_1 without its `value` argument.
# Dropout layers are treated as eval-mode identities.

if __name__ == "__main__":
    key = jax.random.PRNGKey(0)
    B, D, L = 8, 128, 8               # hidden_size=128 is the module default
    k = jax.random.split(key, 6)

    params = init_params(k[0], hidden=D)
    x = jax.random.normal(k[1], (B, 1, D), jnp.float32)
    h = jax.random.normal(k[2], (B, D), jnp.float32)
    content = jax.random.normal(k[3], (B, L, D), jnp.float32)
    authenticity = jax.random.normal(k[4], (B, D), jnp.float32)
    step = jax.random.uniform(k[5], (B,), jnp.float32, 0.0, 1000.0)

    out = condition_net_forward(x, h, step, content, authenticity, params)
    out = jax.block_until_ready(out)

    ref = _reference_forward(x, h, step, content, authenticity, params)
    assert out.shape == (B, D), out.shape
    max_err = float(jnp.max(jnp.abs(out - ref)))
    assert jnp.allclose(out, ref, atol=2e-2, rtol=2e-2), f"mismatch, max_err={max_err}"

    print("KERNEL_OK")
</pallas_src>

<mosaic_0001>
module attributes {stable_mosaic.version = 11 : i64} {
  func.func @_condnet_kernel(%arg0: i32, %arg1: memref<8x1xf32, #tpu.memory_space<vmem>>, %arg2: memref<1x64xf32, #tpu.memory_space<vmem>>, %arg3: memref<8x128xf32, #tpu.memory_space<vmem>>, %arg4: memref<8x128xf32, #tpu.memory_space<vmem>>, %arg5: memref<8x128xf32, #tpu.memory_space<vmem>>, %arg6: memref<8x128xf32, #tpu.memory_space<vmem>>, %arg7: memref<128x128xf32, #tpu.memory_space<vmem>>, %arg8: memref<1x128xf32, #tpu.memory_space<vmem>>, %arg9: memref<64x256xf32, #tpu.memory_space<vmem>>, %arg10: memref<64x256xf32, #tpu.memory_space<vmem>>, %arg11: memref<1x256xf32, #tpu.memory_space<vmem>>, %arg12: memref<256x128xf32, #tpu.memory_space<vmem>>, %arg13: memref<1x128xf32, #tpu.memory_space<vmem>>, %arg14: memref<128x128xf32, #tpu.memory_space<vmem>>, %arg15: memref<128x128xf32, #tpu.memory_space<vmem>>, %arg16: memref<128x128xf32, #tpu.memory_space<vmem>>, %arg17: memref<128x128xf32, #tpu.memory_space<vmem>>, %arg18: memref<1x128xf32, #tpu.memory_space<vmem>>, %arg19: memref<8x128xf32, #tpu.memory_space<vmem>>) attributes {dimension_semantics = [#tpu.dimension_semantics<parallel>], iteration_bounds = array<i64: 1>, scalar_prefetch = 0 : i64, scratch_operands = 0 : i64, tpu.core_type = #tpu.core_type<tc>, window_params = [{transform_indices = @transform_0, window_bounds = array<i64: 8, 1>}, {pipeline_mode = #tpu.pipeline_mode<synchronous>, transform_indices = @transform_1, window_bounds = array<i64: 1, 64>}, {transform_indices = @transform_2, window_bounds = array<i64: 8, 128>}, {transform_indices = @transform_3, window_bounds = array<i64: 8, 128>}, {transform_indices = @transform_4, window_bounds = array<i64: 8, 128>}, {transform_indices = @transform_5, window_bounds = array<i64: 8, 128>}, {pipeline_mode = #tpu.pipeline_mode<synchronous>, transform_indices = @transform_6, window_bounds = array<i64: 128, 128>}, {pipeline_mode = #tpu.pipeline_mode<synchronous>, transform_indices = @transform_7, window_bounds = array<i64: 1, 128>}, {pipeline_mode = #tpu.pipeline_mode<synchronous>, transform_indices = @transform_8, window_bounds = array<i64: 64, 256>}, {pipeline_mode = #tpu.pipeline_mode<synchronous>, transform_indices = @transform_9, window_bounds = array<i64: 64, 256>}, {pipeline_mode = #tpu.pipeline_mode<synchronous>, transform_indices = @transform_10, window_bounds = array<i64: 1, 256>}, {pipeline_mode = #tpu.pipeline_mode<synchronous>, transform_indices = @transform_11, window_bounds = array<i64: 256, 128>}, {pipeline_mode = #tpu.pipeline_mode<synchronous>, transform_indices = @transform_12, window_bounds = array<i64: 1, 128>}, {pipeline_mode = #tpu.pipeline_mode<synchronous>, transform_indices = @transform_13, window_bounds = array<i64: 128, 128>}, {pipeline_mode = #tpu.pipeline_mode<synchronous>, transform_indices = @transform_14, window_bounds = array<i64: 128, 128>}, {pipeline_mode = #tpu.pipeline_mode<synchronous>, transform_indices = @transform_15, window_bounds = array<i64: 128, 128>}, {pipeline_mode = #tpu.pipeline_mode<synchronous>, transform_indices = @transform_16, window_bounds = array<i64: 128, 128>}, {pipeline_mode = #tpu.pipeline_mode<synchronous>, transform_indices = @transform_17, window_bounds = array<i64: 1, 128>}, {transform_indices = @transform_18, window_bounds = array<i64: 8, 128>}]} {
    %c0 = arith.constant 0 : index
    %c0_0 = arith.constant 0 : index
    %0 = vector.load %arg1[%c0, %c0_0] : memref<8x1xf32, #tpu.memory_space<vmem>>, vector<8x1xf32>
    %c0_1 = arith.constant 0 : index
    %c0_2 = arith.constant 0 : index
    %1 = vector.load %arg2[%c0_1, %c0_2] : memref<1x64xf32, #tpu.memory_space<vmem>>, vector<1x64xf32>
    %2 = vector.broadcast %0 : vector<8x1xf32> to vector<8x64xf32>
    %3 = vector.broadcast %1 : vector<1x64xf32> to vector<8x64xf32>
    %4 = arith.mulf %2, %3 : vector<8x64xf32>
    %5 = math.sin %4 : vector<8x64xf32>
    %6 = math.cos %4 : vector<8x64xf32>
    %c0_3 = arith.constant 0 : index
    %c0_4 = arith.constant 0 : index
    %7 = vector.load %arg9[%c0_3, %c0_4] : memref<64x256xf32, #tpu.memory_space<vmem>>, vector<64x256xf32>
    %cst = arith.constant dense<0.000000e+00> : vector<8x256xf32>
    %8 = tpu.matmul %5, %7, %cst {dimension_numbers = #tpu.dot_dimension_numbers<[1], [0], [0], [1], [0, 0, 1, 1], [], []>} : vector<8x64xf32>, vector<64x256xf32>, vector<8x256xf32> -> vector<8x256xf32>
    %c0_5 = arith.constant 0 : index
    %c0_6 = arith.constant 0 : index
    %9 = vector.load %arg10[%c0_5, %c0_6] : memref<64x256xf32, #tpu.memory_space<vmem>>, vector<64x256xf32>
    %cst_7 = arith.constant dense<0.000000e+00> : vector<8x256xf32>
    %10 = tpu.matmul %6, %9, %cst_7 {dimension_numbers = #tpu.dot_dimension_numbers<[1], [0], [0], [1], [0, 0, 1, 1], [], []>} : vector<8x64xf32>, vector<64x256xf32>, vector<8x256xf32> -> vector<8x256xf32>
    %11 = arith.addf %8, %10 : vector<8x256xf32>
    %c0_8 = arith.constant 0 : index
    %c0_9 = arith.constant 0 : index
    %12 = vector.load %arg11[%c0_8, %c0_9] : memref<1x256xf32, #tpu.memory_space<vmem>>, vector<1x256xf32>
    %13 = vector.broadcast %12 : vector<1x256xf32> to vector<8x256xf32>
    %14 = arith.addf %11, %13 : vector<8x256xf32>
    %cst_10 = arith.constant 5.000000e-01 : f32
    %15 = vector.broadcast %cst_10 : f32 to vector<8x256xf32>
    %16 = arith.mulf %15, %14 : vector<8x256xf32>
    %cst_11 = arith.constant 4.471500e-02 : f32
    %17 = vector.broadcast %cst_11 : f32 to vector<8x256xf32>
    %18 = arith.mulf %17, %14 : vector<8x256xf32>
    %19 = arith.mulf %18, %14 : vector<8x256xf32>
    %20 = arith.mulf %19, %14 : vector<8x256xf32>
    %21 = arith.addf %14, %20 : vector<8x256xf32>
    %cst_12 = arith.constant 0.797884583 : f32
    %22 = vector.broadcast %cst_12 : f32 to vector<8x256xf32>
    %23 = arith.mulf %22, %21 : vector<8x256xf32>
    %24 = math.tanh %23 : vector<8x256xf32>
    %cst_13 = arith.constant 1.000000e+00 : f32
    %25 = vector.broadcast %cst_13 : f32 to vector<8x256xf32>
    %26 = arith.addf %25, %24 : vector<8x256xf32>
    %27 = arith.mulf %16, %26 : vector<8x256xf32>
    %c0_14 = arith.constant 0 : index
    %c0_15 = arith.constant 0 : index
    %28 = vector.load %arg12[%c0_14, %c0_15] : memref<256x128xf32, #tpu.memory_space<vmem>>, vector<256x128xf32>
    %cst_16 = arith.constant dense<0.000000e+00> : vector<8x128xf32>
    %29 = tpu.matmul %27, %28, %cst_16 {dimension_numbers = #tpu.dot_dimension_numbers<[1], [0], [0], [1], [0, 0, 1, 1], [], []>} : vector<8x256xf32>, vector<256x128xf32>, vector<8x128xf32> -> vector<8x128xf32>
    %c0_17 = arith.constant 0 : index
    %c0_18 = arith.constant 0 : index
    %30 = vector.load %arg13[%c0_17, %c0_18] : memref<1x128xf32, #tpu.memory_space<vmem>>, vector<1x128xf32>
    %31 = vector.broadcast %30 : vector<1x128xf32> to vector<8x128xf32>
    %32 = arith.addf %29, %31 : vector<8x128xf32>
    %c0_19 = arith.constant 0 : index
    %c0_20 = arith.constant 0 : index
    %33 = vector.load %arg5[%c0_19, %c0_20] : memref<8x128xf32, #tpu.memory_space<vmem>>, vector<8x128xf32>
    %c0_21 = arith.constant 0 : index
    %c0_22 = arith.constant 0 : index
    %34 = vector.load %arg7[%c0_21, %c0_22] : memref<128x128xf32, #tpu.memory_space<vmem>>, vector<128x128xf32>
    %cst_23 = arith.constant dense<0.000000e+00> : vector<8x128xf32>
    %35 = tpu.matmul %33, %34, %cst_23 {dimension_numbers = #tpu.dot_dimension_numbers<[1], [0], [0], [1], [0, 0, 1, 1], [], []>} : vector<8x128xf32>, vector<128x128xf32>, vector<8x128xf32> -> vector<8x128xf32>
    %c0_24 = arith.constant 0 : index
    %c0_25 = arith.constant 0 : index
    %36 = vector.load %arg8[%c0_24, %c0_25] : memref<1x128xf32, #tpu.memory_space<vmem>>, vector<1x128xf32>
    %37 = vector.broadcast %36 : vector<1x128xf32> to vector<8x128xf32>
    %38 = arith.addf %35, %37 : vector<8x128xf32>
    %c0_26 = arith.constant 0 : index
    %c0_27 = arith.constant 0 : index
    %39 = vector.load %arg6[%c0_26, %c0_27] : memref<8x128xf32, #tpu.memory_space<vmem>>, vector<8x128xf32>
    %c0_28 = arith.constant 0 : index
    %c0_29 = arith.constant 0 : index
    %40 = vector.load %arg7[%c0_28, %c0_29] : memref<128x128xf32, #tpu.memory_space<vmem>>, vector<128x128xf32>
    %cst_30 = arith.constant dense<0.000000e+00> : vector<8x128xf32>
    %41 = tpu.matmul %39, %40, %cst_30 {dimension_numbers = #tpu.dot_dimension_numbers<[1], [0], [0], [1], [0, 0, 1, 1], [], []>} : vector<8x128xf32>, vector<128x128xf32>, vector<8x128xf32> -> vector<8x128xf32>
    %c0_31 = arith.constant 0 : index
    %c0_32 = arith.constant 0 : index
    %42 = vector.load %arg8[%c0_31, %c0_32] : memref<1x128xf32, #tpu.memory_space<vmem>>, vector<1x128xf32>
    %43 = vector.broadcast %42 : vector<1x128xf32> to vector<8x128xf32>
    %44 = arith.addf %41, %43 : vector<8x128xf32>
    %45 = arith.mulf %38, %44 : vector<8x128xf32>
    %cst_33 = arith.constant dense<0.000000e+00> : vector<8xf32>
    %46 = vector.multi_reduction <add>, %45, %cst_33 [1] : vector<8x128xf32> to vector<8xf32>
    %47 = vector.shape_cast %46 : vector<8xf32> to vector<8x1xf32>
    %48 = arith.mulf %38, %38 : vector<8x128xf32>
    %cst_34 = arith.constant dense<0.000000e+00> : vector<8xf32>
    %49 = vector.multi_reduction <add>, %48, %cst_34 [1] : vector<8x128xf32> to vector<8xf32>
    %50 = vector.shape_cast %49 : vector<8xf32> to vector<8x1xf32>
    %51 = math.sqrt %50 : vector<8x1xf32>
    %52 = arith.mulf %44, %44 : vector<8x128xf32>
    %cst_35 = arith.constant dense<0.000000e+00> : vector<8xf32>
    %53 = vector.multi_reduction <add>, %52, %cst_35 [1] : vector<8x128xf32> to vector<8xf32>
    %54 = vector.shape_cast %53 : vector<8xf32> to vector<8x1xf32>
    %55 = math.sqrt %54 : vector<8x1xf32>
    %56 = arith.mulf %51, %55 : vector<8x1xf32>
    %cst_36 = arith.constant 9.99999993E-9 : f32
    %57 = vector.broadcast %cst_36 : f32 to vector<8x1xf32>
    %58 = arith.maximumf %56, %57 : vector<8x1xf32>
    %59 = arith.divf %47, %58 : vector<8x1xf32>
    %60 = math.tanh %59 : vector<8x1xf32>
    %cst_37 = arith.constant 1.000000e+00 : f32
    %61 = vector.broadcast %cst_37 : f32 to vector<8x1xf32>
    %62 = arith.addf %61, %60 : vector<8x1xf32>
    %cst_38 = arith.constant 5.000000e-01 : f32
    %63 = vector.broadcast %cst_38 : f32 to vector<8x1xf32>
    %64 = arith.mulf %63, %62 : vector<8x1xf32>
    %65 = vector.broadcast %64 : vector<8x1xf32> to vector<8x128xf32>
    %66 = arith.mulf %38, %65 : vector<8x128xf32>
    %cst_39 = arith.constant 1.000000e+00 : f32
    %67 = vector.broadcast %cst_39 : f32 to vector<8x1xf32>
    %68 = arith.subf %67, %64 : vector<8x1xf32>
    %69 = vector.broadcast %68 : vector<8x1xf32> to vector<8x128xf32>
    %70 = arith.mulf %44, %69 : vector<8x128xf32>
    %71 = arith.addf %66, %70 : vector<8x128xf32>
    %c0_40 = arith.constant 0 : index
    %c0_41 = arith.constant 0 : index
    %72 = vector.load %arg3[%c0_40, %c0_41] : memref<8x128xf32, #tpu.memory_space<vmem>>, vector<8x128xf32>
    %c0_42 = arith.constant 0 : index
    %c0_43 = arith.constant 0 : index
    %73 = vector.load %arg14[%c0_42, %c0_43] : memref<128x128xf32, #tpu.memory_space<vmem>>, vector<128x128xf32>
    %cst_44 = arith.constant dense<0.000000e+00> : vector<8x128xf32>
    %74 = tpu.matmul %72, %73, %cst_44 {dimension_numbers = #tpu.dot_dimension_numbers<[1], [0], [0], [1], [0, 0, 1, 1], [], []>} : vector<8x128xf32>, vector<128x128xf32>, vector<8x128xf32> -> vector<8x128xf32>
    %c0_45 = arith.constant 0 : index
    %c0_46 = arith.constant 0 : index
    %75 = vector.load %arg4[%c0_45, %c0_46] : memref<8x128xf32, #tpu.memory_space<vmem>>, vector<8x128xf32>
    %c0_47 = arith.constant 0 : index
    %c0_48 = arith.constant 0 : index
    %76 = vector.load %arg15[%c0_47, %c0_48] : memref<128x128xf32, #tpu.memory_space<vmem>>, vector<128x128xf32>
    %cst_49 = arith.constant dense<0.000000e+00> : vector<8x128xf32>
    %77 = tpu.matmul %75, %76, %cst_49 {dimension_numbers = #tpu.dot_dimension_numbers<[1], [0], [0], [1], [0, 0, 1, 1], [], []>} : vector<8x128xf32>, vector<128x128xf32>, vector<8x128xf32> -> vector<8x128xf32>
    %78 = arith.addf %74, %77 : vector<8x128xf32>
    %c0_50 = arith.constant 0 : index
    %c0_51 = arith.constant 0 : index
    %79 = vector.load %arg16[%c0_50, %c0_51] : memref<128x128xf32, #tpu.memory_space<vmem>>, vector<128x128xf32>
    %cst_52 = arith.constant dense<0.000000e+00> : vector<8x128xf32>
    %80 = tpu.matmul %32, %79, %cst_52 {dimension_numbers = #tpu.dot_dimension_numbers<[1], [0], [0], [1], [0, 0, 1, 1], [], []>} : vector<8x128xf32>, vector<128x128xf32>, vector<8x128xf32> -> vector<8x128xf32>
    %81 = arith.addf %78, %80 : vector<8x128xf32>
    %c0_53 = arith.constant 0 : index
    %c0_54 = arith.constant 0 : index
    %82 = vector.load %arg17[%c0_53, %c0_54] : memref<128x128xf32, #tpu.memory_space<vmem>>, vector<128x128xf32>
    %cst_55 = arith.constant dense<0.000000e+00> : vector<8x128xf32>
    %83 = tpu.matmul %71, %82, %cst_55 {dimension_numbers = #tpu.dot_dimension_numbers<[1], [0], [0], [1], [0, 0, 1, 1], [], []>} : vector<8x128xf32>, vector<128x128xf32>, vector<8x128xf32> -> vector<8x128xf32>
    %84 = arith.addf %81, %83 : vector<8x128xf32>
    %c0_56 = arith.constant 0 : index
    %c0_57 = arith.constant 0 : index
    %85 = vector.load %arg18[%c0_56, %c0_57] : memref<1x128xf32, #tpu.memory_space<vmem>>, vector<1x128xf32>
    %86 = vector.broadcast %85 : vector<1x128xf32> to vector<8x128xf32>
    %87 = arith.addf %84, %86 : vector<8x128xf32>
    %c0_58 = arith.constant 0 : index
    %c0_59 = arith.constant 0 : index
    %88 = vector.load %arg19[%c0_58, %c0_59] : memref<8x128xf32, #tpu.memory_space<vmem>>, vector<8x128xf32>
    tpu.vector_store %arg19[%c0_58, %c0_59], %87 {strides = array<i32>} : memref<8x128xf32, #tpu.memory_space<vmem>>, vector<8x128xf32>,
    return
  }
  func.func @transform_0(%arg0: i32) -> (i32, i32) {
    %c0_i32 = arith.constant 0 : i32
    %c0_i32_0 = arith.constant 0 : i32
    return %arg0, %c0_i32 : i32, i32
  }
  func.func @transform_1(%arg0: i32) -> (i32, i32) {
    %c0_i32 = arith.constant 0 : i32
    %c0_i32_0 = arith.constant 0 : i32
    %c0_i32_1 = arith.constant 0 : i32
    return %c0_i32, %c0_i32_0 : i32, i32
  }
  func.func @transform_2(%arg0: i32) -> (i32, i32) {
    %c0_i32 = arith.constant 0 : i32
    %c0_i32_0 = arith.constant 0 : i32
    return %arg0, %c0_i32 : i32, i32
  }
  func.func @transform_3(%arg0: i32) -> (i32, i32) {
    %c0_i32 = arith.constant 0 : i32
    %c0_i32_0 = arith.constant 0 : i32
    return %arg0, %c0_i32 : i32, i32
  }
  func.func @transform_4(%arg0: i32) -> (i32, i32) {
    %c0_i32 = arith.constant 0 : i32
    %c0_i32_0 = arith.constant 0 : i32
    return %arg0, %c0_i32 : i32, i32
  }
  func.func @transform_5(%arg0: i32) -> (i32, i32) {
    %c0_i32 = arith.constant 0 : i32
    %c0_i32_0 = arith.constant 0 : i32
    return %arg0, %c0_i32 : i32, i32
  }
  func.func @transform_6(%arg0: i32) -> (i32, i32) {
    %c0_i32 = arith.constant 0 : i32
    %c0_i32_0 = arith.constant 0 : i32
    %c0_i32_1 = arith.constant 0 : i32
    return %c0_i32, %c0_i32_0 : i32, i32
  }
  func.func @transform_7(%arg0: i32) -> (i32, i32) {
    %c0_i32 = arith.constant 0 : i32
    %c0_i32_0 = arith.constant 0 : i32
    %c0_i32_1 = arith.constant 0 : i32
    return %c0_i32, %c0_i32_0 : i32, i32
  }
  func.func @transform_8(%arg0: i32) -> (i32, i32) {
    %c0_i32 = arith.constant 0 : i32
    %c0_i32_0 = arith.constant 0 : i32
    %c0_i32_1 = arith.constant 0 : i32
    return %c0_i32, %c0_i32_0 : i32, i32
  }
  func.func @transform_9(%arg0: i32) -> (i32, i32) {
    %c0_i32 = arith.constant 0 : i32
    %c0_i32_0 = arith.constant 0 : i32
    %c0_i32_1 = arith.constant 0 : i32
    return %c0_i32, %c0_i32_0 : i32, i32
  }
  func.func @transform_10(%arg0: i32) -> (i32, i32) {
    %c0_i32 = arith.constant 0 : i32
    %c0_i32_0 = arith.constant 0 : i32
    %c0_i32_1 = arith.constant 0 : i32
    return %c0_i32, %c0_i32_0 : i32, i32
  }
  func.func @transform_11(%arg0: i32) -> (i32, i32) {
    %c0_i32 = arith.constant 0 : i32
    %c0_i32_0 = arith.constant 0 : i32
    %c0_i32_1 = arith.constant 0 : i32
    return %c0_i32, %c0_i32_0 : i32, i32
  }
  func.func @transform_12(%arg0: i32) -> (i32, i32) {
    %c0_i32 = arith.constant 0 : i32
    %c0_i32_0 = arith.constant 0 : i32
    %c0_i32_1 = arith.constant 0 : i32
    return %c0_i32, %c0_i32_0 : i32, i32
  }
  func.func @transform_13(%arg0: i32) -> (i32, i32) {
    %c0_i32 = arith.constant 0 : i32
    %c0_i32_0 = arith.constant 0 : i32
    %c0_i32_1 = arith.constant 0 : i32
    return %c0_i32, %c0_i32_0 : i32, i32
  }
  func.func @transform_14(%arg0: i32) -> (i32, i32) {
    %c0_i32 = arith.constant 0 : i32
    %c0_i32_0 = arith.constant 0 : i32
    %c0_i32_1 = arith.constant 0 : i32
    return %c0_i32, %c0_i32_0 : i32, i32
  }
  func.func @transform_15(%arg0: i32) -> (i32, i32) {
    %c0_i32 = arith.constant 0 : i32
    %c0_i32_0 = arith.constant 0 : i32
    %c0_i32_1 = arith.constant 0 : i32
    return %c0_i32, %c0_i32_0 : i32, i32
  }
  func.func @transform_16(%arg0: i32) -> (i32, i32) {
    %c0_i32 = arith.constant 0 : i32
    %c0_i32_0 = arith.constant 0 : i32
    %c0_i32_1 = arith.constant 0 : i32
    return %c0_i32, %c0_i32_0 : i32, i32
  }
  func.func @transform_17(%arg0: i32) -> (i32, i32) {
    %c0_i32 = arith.constant 0 : i32
    %c0_i32_0 = arith.constant 0 : i32
    %c0_i32_1 = arith.constant 0 : i32
    return %c0_i32, %c0_i32_0 : i32, i32
  }
  func.func @transform_18(%arg0: i32) -> (i32, i32) {
    %c0_i32 = arith.constant 0 : i32
    %c0_i32_0 = arith.constant 0 : i32
    return %arg0, %c0_i32 : i32, i32
  }
}

</mosaic_0001>

<llo_original>
// kernel: tpu_custom_call.1
$region0: #{tpu_custom_call.1}
  #allocation0 [shape = 'u32[]', space=smem, size = 0x4, offset = 0x4, fixed_abs, tag = 'smem constant byte address 0x4 - core index']
  #allocation1 [shape = 'u32[72,128]{1,0:T(1,128)}', space=vmem, size = 0x9000, scoped, tag = 'internal scratch']
  %s0 = inlined_call_operand.vmem [shape: f32[8,1], index: 0, kind: input, shape index: {}]
  %s1 = inlined_call_operand.hbm [shape: f32[1,64], index: 1, kind: input, shape index: {}]
  %s2 = inlined_call_operand.vmem [shape: f32[8,128], index: 2, kind: input, shape index: {}]
  %s3 = inlined_call_operand.hbm [shape: f32[8,128], index: 3, kind: input, shape index: {}]
  %s4 = inlined_call_operand.hbm [shape: f32[8,128], index: 4, kind: input, shape index: {}]
  %s5 = inlined_call_operand.hbm [shape: f32[8,128], index: 5, kind: input, shape index: {}]
  %s6 = inlined_call_operand.hbm [shape: f32[128,128], index: 6, kind: input, shape index: {}]
  %s7 = inlined_call_operand.vmem [shape: f32[1,128], index: 7, kind: input, shape index: {}]
  %s8 = inlined_call_operand.hbm [shape: f32[64,256], index: 8, kind: input, shape index: {}]
  %s9 = inlined_call_operand.hbm [shape: f32[64,256], index: 9, kind: input, shape index: {}]
  %s10 = inlined_call_operand.vmem [shape: f32[1,256], index: 10, kind: input, shape index: {}]
  %s11 = inlined_call_operand.hbm [shape: f32[256,128], index: 11, kind: input, shape index: {}]
  %s12 = inlined_call_operand.vmem [shape: f32[1,128], index: 12, kind: input, shape index: {}]
  %s13 = inlined_call_operand.hbm [shape: f32[128,128], index: 13, kind: input, shape index: {}]
  %s14 = inlined_call_operand.hbm [shape: f32[128,128], index: 14, kind: input, shape index: {}]
  %s15 = inlined_call_operand.hbm [shape: f32[128,128], index: 15, kind: input, shape index: {}]
  %s16 = inlined_call_operand.hbm [shape: f32[128,128], index: 16, kind: input, shape index: {}]
  %s17 = inlined_call_operand.vmem [shape: f32[1,128], index: 17, kind: input, shape index: {}]
  %s18 = inlined_call_operand.hbm [shape: f32[8,128], index: 18, kind: output, shape index: {}]
  %s19 = sld [smem:[#allocation0]]
  $region130: #{tpu_custom_call.1} parent=0
    _
  %s21 = ssub.s32 1, %s19
  %s22 = scalar_select 0, %s21, %s19
  $region1: #{tpu_custom_call.1} parent=0
    #allocation2 [shape = 'u8[512]{0}', space=vmem, size = 0x400, scoped, tag = 'input window, operand 1, single buffered']
    #allocation3 [shape = 's32[1]{0}', space=sflag, size = 0x4, scoped, tag = 'scoped memory for tpu_custom_call.1']
    #allocation4 [shape = 's32[1]{0}', space=sflag, size = 0x4, scoped, tag = 'scoped memory for tpu_custom_call.1']
    #allocation5 [shape = 'u8[4096]{0}', space=vmem, size = 0x1000, scoped, tag = 'input window, operand 3, single buffered']
    #allocation6 [shape = 's32[1]{0}', space=sflag, size = 0x4, scoped, tag = 'scoped memory for tpu_custom_call.1']
    #allocation7 [shape = 'u8[4096]{0}', space=vmem, size = 0x1000, scoped, tag = 'input window, operand 4, single buffered']
    #allocation8 [shape = 'u8[4096]{0}', space=vmem, size = 0x1000, scoped, tag = 'input window, operand 5, single buffered']
    #allocation9 [shape = 's32[1]{0}', space=sflag, size = 0x4, scoped, tag = 'scoped memory for tpu_custom_call.1']
    #allocation10 [shape = 'u8[65536]{0}', space=vmem, size = 0x10000, scoped, tag = 'input window, operand 6, single buffered']
    #allocation11 [shape = 'u8[65536]{0}', space=vmem, size = 0x10000, scoped, tag = 'input window, operand 8, single buffered']
    #allocation12 [shape = 's32[1]{0}', space=sflag, size = 0x4, scoped, tag = 'scoped memory for tpu_custom_call.1']
    #allocation13 [shape = 'u8[65536]{0}', space=vmem, size = 0x10000, scoped, tag = 'input window, operand 9, single buffered']
    #allocation14 [shape = 'u8[131072]{0}', space=vmem, size = 0x20000, scoped, tag = 'input window, operand 11, single buffered']
    #allocation15 [shape = 's32[1]{0}', space=sflag, size = 0x4, scoped, tag = 'scoped memory for tpu_custom_call.1']
    #allocation16 [shape = 'u8[65536]{0}', space=vmem, size = 0x10000, scoped, tag = 'input window, operand 13, single buffered']
    #allocation17 [shape = 'u8[65536]{0}', space=vmem, size = 0x10000, scoped, tag = 'input window, operand 14, single buffered']
    #allocation18 [shape = 's32[1]{0}', space=sflag, size = 0x4, scoped, tag = 'scoped memory for tpu_custom_call.1']
    #allocation19 [shape = 'u8[65536]{0}', space=vmem, size = 0x10000, scoped, tag = 'input window, operand 15, single buffered']
    #allocation20 [shape = 'u8[65536]{0}', space=vmem, size = 0x10000, scoped, tag = 'input window, operand 16, single buffered']
    #allocation21 [shape = 's32[1]{0}', space=sflag, size = 0x4, scoped, tag = 'scoped memory for tpu_custom_call.1']
    #allocation22 [shape = 'u8[4096]{0}', space=vmem, size = 0x1000, scoped, tag = 'output window, operand 0, single buffered']
    %23 = vsyncpa [#allocation3], 0
    %24 = vsyncpa [#allocation6], 0
    %25 = vsyncpa [#allocation9], 0
    %26 = vsyncpa [#allocation12], 0
    %27 = vsyncpa [#allocation15], 0
    %28 = vsyncpa [#allocation18], 0
    %29 = vsyncpa [#allocation21], 0
    %30 = vsyncpa [#allocation4], 0
    // Predicated region
    $region2: #{tpu_custom_call.1} parent=1 // pred_check
      _
    $region3: #{tpu_custom_call.1} parent=1 // pred_check_branch
      %32 = sbr.rel (0) target = $region5
    $region4: #{tpu_custom_call.1} parent=1 // pred_region
      _
    $region5: #{tpu_custom_call.1} parent=1 // pred_fallthru
      _
    // Predicated region
    $region6: #{tpu_custom_call.1} parent=1 // pred_check
      _
    $region7: #{tpu_custom_call.1} parent=1 // pred_check_branch
      %34 = sbr.rel (0) target = $region9
    $region8: #{tpu_custom_call.1} parent=1 // pred_region
      %36 = vsyncadd [#allocation3], 0
      %s38 = sshll.u32 %s1, 4
      %s39 = int_to_ptr.hbm [resolvable:$true] %s38
      %s40 = sshll.u32 [#allocation2], 4
      %s41 = int_to_ptr.vmem [resolvable:$true] %s40
      %43 = dma.hbm_to_vmem [thread:$0]  %s39, 16, %s41, [#allocation3]
    $region9: #{tpu_custom_call.1} parent=1 // pred_fallthru
      _
    // Predicated region
    $region10: #{tpu_custom_call.1} parent=1 // pred_check
      _
    $region11: #{tpu_custom_call.1} parent=1 // pred_check_branch
      %45 = sbr.rel (0) target = $region13
    $region12: #{tpu_custom_call.1} parent=1 // pred_region
      _
    $region13: #{tpu_custom_call.1} parent=1 // pred_fallthru
      _
    // Predicated region
    $region14: #{tpu_custom_call.1} parent=1 // pred_check
      _
    $region15: #{tpu_custom_call.1} parent=1 // pred_check_branch
      %47 = sbr.rel (0) target = $region17
    $region16: #{tpu_custom_call.1} parent=1 // pred_region
      %49 = vsyncadd [#allocation6], 0
      %s51 = sshll.u32 %s3, 4
      %s52 = int_to_ptr.hbm [resolvable:$true] %s51
      %s53 = sshll.u32 [#allocation5], 4
      %s54 = int_to_ptr.vmem [resolvable:$true] %s53
      %56 = dma.hbm_to_vmem [thread:$0]  %s52, 128, %s54, [#allocation6]
    $region17: #{tpu_custom_call.1} parent=1 // pred_fallthru
      _
    // Predicated region
    $region18: #{tpu_custom_call.1} parent=1 // pred_check
      _
    $region19: #{tpu_custom_call.1} parent=1 // pred_check_branch
      %58 = sbr.rel (0) target = $region21
    $region20: #{tpu_custom_call.1} parent=1 // pred_region
      %60 = vsyncadd [#allocation6], 0
      %s62 = sshll.u32 %s4, 4
      %s63 = int_to_ptr.hbm [resolvable:$true] %s62
      %s64 = sshll.u32 [#allocation7], 4
      %s65 = int_to_ptr.vmem [resolvable:$true] %s64
      %67 = dma.hbm_to_vmem [thread:$0]  %s63, 128, %s65, [#allocation6]
    $region21: #{tpu_custom_call.1} parent=1 // pred_fallthru
      _
    // Predicated region
    $region22: #{tpu_custom_call.1} parent=1 // pred_check
      _
    $region23: #{tpu_custom_call.1} parent=1 // pred_check_branch
      %69 = sbr.rel (0) target = $region25
    $region24: #{tpu_custom_call.1} parent=1 // pred_region
      %71 = vsyncadd [#allocation9], 0
      %s73 = sshll.u32 %s5, 4
      %s74 = int_to_ptr.hbm [resolvable:$true] %s73
      %s75 = sshll.u32 [#allocation8], 4
      %s76 = int_to_ptr.vmem [resolvable:$true] %s75
      %78 = dma.hbm_to_vmem [thread:$0]  %s74, 128, %s76, [#allocation9]
    $region25: #{tpu_custom_call.1} parent=1 // pred_fallthru
      _
    // Predicated region
    $region26: #{tpu_custom_call.1} parent=1 // pred_check
      _
    $region27: #{tpu_custom_call.1} parent=1 // pred_check_branch
      %80 = sbr.rel (0) target = $region29
    $region28: #{tpu_custom_call.1} parent=1 // pred_region
      %82 = vsyncadd [#allocation9], 0
      %s83 = sshll.u32 %s6, 4
      %s84 = int_to_ptr.hbm [resolvable:$true] %s83
      %s85 = sshll.u32 [#allocation10], 4
      %s86 = int_to_ptr.vmem [resolvable:$true] %s85
      %91 = dma.hbm_to_vmem [thread:$0]  %s84, 2048, %s86, [#allocation9], 128, 128, 8
    $region29: #{tpu_custom_call.1} parent=1 // pred_fallthru
      _
    // Predicated region
    $region30: #{tpu_custom_call.1} parent=1 // pred_check
      _
    $region31: #{tpu_custom_call.1} parent=1 // pred_check_branch
      %93 = sbr.rel (0) target = $region33
    $region32: #{tpu_custom_call.1} parent=1 // pred_region
      _
    $region33: #{tpu_custom_call.1} parent=1 // pred_fallthru
      _
    // Predicated region
    $region34: #{tpu_custom_call.1} parent=1 // pred_check
      _
    $region35: #{tpu_custom_call.1} parent=1 // pred_check_branch
      %95 = sbr.rel (0) target = $region37
    $region36: #{tpu_custom_call.1} parent=1 // pred_region
      %97 = vsyncadd [#allocation12], 0
      %s98 = sshll.u32 %s8, 4
      %s99 = int_to_ptr.hbm [resolvable:$true] %s98
      %s100 = sshll.u32 [#allocation11], 4
      %s101 = int_to_ptr.vmem [resolvable:$true] %s100
      %106 = dma.hbm_to_vmem [thread:$0]  %s99, 2048, %s101, [#allocation12], 256, 256, 16
    $region37: #{tpu_custom_call.1} parent=1 // pred_fallthru
      _
    // Predicated region
    $region38: #{tpu_custom_call.1} parent=1 // pred_check
      _
    $region39: #{tpu_custom_call.1} parent=1 // pred_check_branch
      %108 = sbr.rel (0) target = $region41
    $region40: #{tpu_custom_call.1} parent=1 // pred_region
      %110 = vsyncadd [#allocation12], 0
      %s111 = sshll.u32 %s9, 4
      %s112 = int_to_ptr.hbm [resolvable:$true] %s111
      %s113 = sshll.u32 [#allocation13], 4
      %s114 = int_to_ptr.vmem [resolvable:$true] %s113
      %119 = dma.hbm_to_vmem [thread:$0]  %s112, 2048, %s114, [#allocation12], 256, 256, 16
    $region41: #{tpu_custom_call.1} parent=1 // pred_fallthru
      _
    // Predicated region
    $region42: #{tpu_custom_call.1} parent=1 // pred_check
      _
    $region43: #{tpu_custom_call.1} parent=1 // pred_check_branch
      %121 = sbr.rel (0) target = $region45
    $region44: #{tpu_custom_call.1} parent=1 // pred_region
      _
    $region45: #{tpu_custom_call.1} parent=1 // pred_fallthru
      _
    // Predicated region
    $region46: #{tpu_custom_call.1} parent=1 // pred_check
      _
    $region47: #{tpu_custom_call.1} parent=1 // pred_check_branch
      %123 = sbr.rel (0) target = $region49
    $region48: #{tpu_custom_call.1} parent=1 // pred_region
      %125 = vsyncadd [#allocation15], 0
      %s126 = sshll.u32 %s11, 4
      %s127 = int_to_ptr.hbm [resolvable:$true] %s126
      %s128 = sshll.u32 [#allocation14], 4
      %s129 = int_to_ptr.vmem [resolvable:$true] %s128
      %134 = dma.hbm_to_vmem [thread:$0]  %s127, 4096, %s129, [#allocation15], 128, 128, 8
    $region49: #{tpu_custom_call.1} parent=1 // pred_fallthru
      _
    // Predicated region
    $region50: #{tpu_custom_call.1} parent=1 // pred_check
      _
    $region51: #{tpu_custom_call.1} parent=1 // pred_check_branch
      %136 = sbr.rel (0) target = $region53
    $region52: #{tpu_custom_call.1} parent=1 // pred_region
      _
    $region53: #{tpu_custom_call.1} parent=1 // pred_fallthru
      _
    // Predicated region
    $region54: #{tpu_custom_call.1} parent=1 // pred_check
      _
    $region55: #{tpu_custom_call.1} parent=1 // pred_check_branch
      %138 = sbr.rel (0) target = $region57
    $region56: #{tpu_custom_call.1} parent=1 // pred_region
      %140 = vsyncadd [#allocation15], 0
      %s141 = sshll.u32 %s13, 4
      %s142 = int_to_ptr.hbm [resolvable:$true] %s141
      %s143 = sshll.u32 [#allocation16], 4
      %s144 = int_to_ptr.vmem [resolvable:$true] %s143
      %149 = dma.hbm_to_vmem [thread:$0]  %s142, 2048, %s144, [#allocation15], 128, 128, 8
    $region57: #{tpu_custom_call.1} parent=1 // pred_fallthru
      _
    // Predicated region
    $region58: #{tpu_custom_call.1} parent=1 // pred_check
      _
    $region59: #{tpu_custom_call.1} parent=1 // pred_check_branch
      %151 = sbr.rel (0) target = $region61
    $region60: #{tpu_custom_call.1} parent=1 // pred_region
      %153 = vsyncadd [#allocation18], 0
      %s154 = sshll.u32 %s14, 4
      %s155 = int_to_ptr.hbm [resolvable:$true] %s154
      %s156 = sshll.u32 [#allocation17], 4
      %s157 = int_to_ptr.vmem [resolvable:$true] %s156
      %162 = dma.hbm_to_vmem [thread:$0]  %s155, 2048, %s157, [#allocation18], 128, 128, 8
    $region61: #{tpu_custom_call.1} parent=1 // pred_fallthru
      _
    // Predicated region
    $region62: #{tpu_custom_call.1} parent=1 // pred_check
      _
    $region63: #{tpu_custom_call.1} parent=1 // pred_check_branch
      %164 = sbr.rel (0) target = $region65
    $region64: #{tpu_custom_call.1} parent=1 // pred_region
      %166 = vsyncadd [#allocation18], 0
      %s167 = sshll.u32 %s15, 4
      %s168 = int_to_ptr.hbm [resolvable:$true] %s167
      %s169 = sshll.u32 [#allocation19], 4
      %s170 = int_to_ptr.vmem [resolvable:$true] %s169
      %175 = dma.hbm_to_vmem [thread:$0]  %s168, 2048, %s170, [#allocation18], 128, 128, 8
    $region65: #{tpu_custom_call.1} parent=1 // pred_fallthru
      _
    // Predicated region
    $region66: #{tpu_custom_call.1} parent=1 // pred_check
      _
    $region67: #{tpu_custom_call.1} parent=1 // pred_check_branch
      %177 = sbr.rel (0) target = $region69
    $region68: #{tpu_custom_call.1} parent=1 // pred_region
      %179 = vsyncadd [#allocation21], 0
      %s180 = sshll.u32 %s16, 4
      %s181 = int_to_ptr.hbm [resolvable:$true] %s180
      %s182 = sshll.u32 [#allocation20], 4
      %s183 = int_to_ptr.vmem [resolvable:$true] %s182
      %188 = dma.hbm_to_vmem [thread:$0]  %s181, 2048, %s183, [#allocation21], 128, 128, 8
    $region69: #{tpu_custom_call.1} parent=1 // pred_fallthru
      _
    // Predicated region
    $region70: #{tpu_custom_call.1} parent=1 // pred_check
      _
    $region71: #{tpu_custom_call.1} parent=1 // pred_check_branch
      %190 = sbr.rel (0) target = $region73
    $region72: #{tpu_custom_call.1} parent=1 // pred_region
      _
    $region73: #{tpu_custom_call.1} parent=1 // pred_fallthru
      _
    // Predicated region
    $region74: #{tpu_custom_call.1} parent=1 // pred_check
      _
    $region75: #{tpu_custom_call.1} parent=1 // pred_check_branch
      %192 = sbr.rel (0) target = $region77
    $region76: #{tpu_custom_call.1} parent=1 // pred_region
      %194 = dma.done [#allocation3], 16
    $region77: #{tpu_custom_call.1} parent=1 // pred_fallthru
      _
    // Predicated region
    $region78: #{tpu_custom_call.1} parent=1 // pred_check
      _
    $region79: #{tpu_custom_call.1} parent=1 // pred_check_branch
      %196 = sbr.rel (0) target = $region81
    $region80: #{tpu_custom_call.1} parent=1 // pred_region
      %198 = dma.done [#allocation6], 128
    $region81: #{tpu_custom_call.1} parent=1 // pred_fallthru
      _
    // Predicated region
    $region82: #{tpu_custom_call.1} parent=1 // pred_check
      _
    $region83: #{tpu_custom_call.1} parent=1 // pred_check_branch
      %200 = sbr.rel (0) target = $region85
    $region84: #{tpu_custom_call.1} parent=1 // pred_region
      %202 = dma.done [#allocation6], 128
    $region85: #{tpu_custom_call.1} parent=1 // pred_fallthru
      _
    // Predicated region
    $region86: #{tpu_custom_call.1} parent=1 // pred_check
      _
    $region87: #{tpu_custom_call.1} parent=1 // pred_check_branch
      %204 = sbr.rel (0) target = $region89
    $region88: #{tpu_custom_call.1} parent=1 // pred_region
      %206 = dma.done [#allocation9], 128
    $region89: #{tpu_custom_call.1} parent=1 // pred_fallthru
      _
    // Predicated region
    $region90: #{tpu_custom_call.1} parent=1 // pred_check
      _
    $region91: #{tpu_custom_call.1} parent=1 // pred_check_branch
      %208 = sbr.rel (0) target = $region93
    $region92: #{tpu_custom_call.1} parent=1 // pred_region
      %210 = dma.done [#allocation9], 2048
    $region93: #{tpu_custom_call.1} parent=1 // pred_fallthru
      _
    // Predicated region
    $region94: #{tpu_custom_call.1} parent=1 // pred_check
      _
    $region95: #{tpu_custom_call.1} parent=1 // pred_check_branch
      %212 = sbr.rel (0) target = $region97
    $region96: #{tpu_custom_call.1} parent=1 // pred_region
      %214 = dma.done [#allocation12], 2048
    $region97: #{tpu_custom_call.1} parent=1 // pred_fallthru
      _
    // Predicated region
    $region98: #{tpu_custom_call.1} parent=1 // pred_check
      _
    $region99: #{tpu_custom_call.1} parent=1 // pred_check_branch
      %216 = sbr.rel (0) target = $region101
    $region100: #{tpu_custom_call.1} parent=1 // pred_region
      %218 = dma.done [#allocation12], 2048
    $region101: #{tpu_custom_call.1} parent=1 // pred_fallthru
      _
    // Predicated region
    $region102: #{tpu_custom_call.1} parent=1 // pred_check
      _
    $region103: #{tpu_custom_call.1} parent=1 // pred_check_branch
      %220 = sbr.rel (0) target = $region105
    $region104: #{tpu_custom_call.1} parent=1 // pred_region
      %222 = dma.done [#allocation15], 4096
    $region105: #{tpu_custom_call.1} parent=1 // pred_fallthru
      _
    // Predicated region
    $region106: #{tpu_custom_call.1} parent=1 // pred_check
      _
    $region107: #{tpu_custom_call.1} parent=1 // pred_check_branch
      %224 = sbr.rel (0) target = $region109
    $region108: #{tpu_custom_call.1} parent=1 // pred_region
      %226 = dma.done [#allocation15], 2048
    $region109: #{tpu_custom_call.1} parent=1 // pred_fallthru
      _
    // Predicated region
    $region110: #{tpu_custom_call.1} parent=1 // pred_check
      _
    $region111: #{tpu_custom_call.1} parent=1 // pred_check_branch
      %228 = sbr.rel (0) target = $region113
    $region112: #{tpu_custom_call.1} parent=1 // pred_region
      %230 = dma.done [#allocation18], 2048
    $region113: #{tpu_custom_call.1} parent=1 // pred_fallthru
      _
    // Predicated region
    $region114: #{tpu_custom_call.1} parent=1 // pred_check
      _
    $region115: #{tpu_custom_call.1} parent=1 // pred_check_branch
      %232 = sbr.rel (0) target = $region117
    $region116: #{tpu_custom_call.1} parent=1 // pred_region
      %234 = dma.done [#allocation18], 2048
    $region117: #{tpu_custom_call.1} parent=1 // pred_fallthru
      _
    // Predicated region
    $region118: #{tpu_custom_call.1} parent=1 // pred_check
      _
    $region119: #{tpu_custom_call.1} parent=1 // pred_check_branch
      %236 = sbr.rel (0) target = $region121
    $region120: #{tpu_custom_call.1} parent=1 // pred_region
      %238 = dma.done [#allocation21], 2048
    $region121: #{tpu_custom_call.1} parent=1 // pred_fallthru
      _
    %v239 = vld [vmem:[%s0] sm:$0xff]
    %v240 = vld [vmem:[#allocation2] sm:$0x1]
    %242 = vset.pattern.permute.xlu0 0
    %243 = vperm.xlu0 %242, %v239
    %v244 = vpop.permute.xlu0 %243
    %v247 = vperm.slane %v240, 0
    %v249 = vmul.f32 %v244, %v247
    %v250 = vand.u32 2147483647, %v249
    %vm251 = vcmp.le.f32.partialorder %v250, 0.7853982
    %vm252 = vcmp.lt.s32.totalorder %v249, 0
    %v253 = vand.u32 %v249, 2139095040
    %v254 = vshrl.u32 %v253, 23
    %v255 = vsub.s32 %v254, 127
    %v256 = vand.u32 2147483647, %v249
    %v257 = vand.u32 %v256, 8388607
    %v258 = vor.u32 %v257, 8388608
    %v259 = vsub.s32 0, %v258
    %v260 = vadd.s32 %v255, 1
    %vm261 = vcmp.gt.s32.totalorder %v260, 0
    %v262 = vsel %vm261, %v260, 0
    %v263 = vshrl.u32 %v262, 5
    %v264 = vand.u32 %v262, 31
    %v265 = vsub.s32 32, %v264
    %v266 = vshrl.u32 683565275, %v265
    %v267 = vshll.u32 683565275, %v264
    %v268 = vshrl.u32 2475754826, %v265
    %v269 = vor.u32 %v267, %v268
    %v270 = vshll.u32 2475754826, %v264
    %v271 = vshrl.u32 2131351028, %v265
    %v272 = vor.u32 %v270, %v271
    %v273 = vshll.u32 2131351028, %v264
    %v274 = vshrl.u32 2102212464, %v265
    %v275 = vor.u32 %v273, %v274
    %v276 = vshll.u32 2102212464, %v264
    %v277 = vshrl.u32 920167782, %v265
    %v278 = vor.u32 %v276, %v277
    %v279 = vshll.u32 920167782, %v264
    %v280 = vshrl.u32 1326507024, %v265
    %v281 = vor.u32 %v279, %v280
    %vm282 = vcmp.lt.s32.totalorder %v263, 1
    %vm283 = vcmp.lt.s32.totalorder %v263, 2
    %vm284 = vcmp.lt.s32.totalorder %v263, 3
    %vm285 = vcmp.lt.s32.totalorder %v263, 4
    %v286 = vsel %vm282, %v266, %v269
    %v287 = vsel %vm285, %v275, 2102212464
    %v288 = vsel %vm284, %v272, %v287
    %v289 = vsel %vm283, %v286, %v288
    %v290 = vsel %vm282, %v269, %v272
    %v291 = vsel %vm285, %v278, 920167782
    %v292 = vsel %vm284, %v275, %v291
    %v293 = vsel %vm283, %v290, %v292
    %v294 = vsel %vm282, %v272, %v275
    %v295 = vsel %vm285, %v281, 1326507024
    %v296 = vsel %vm284, %v278, %v295
    %v297 = vsel %vm283, %v294, %v296
    %v298 = vshll.u32 %v258, 8
    %v299 = vand.u32 %v298, 65535
    %v300 = vshrl.u32 %v298, 16
    %v301 = vand.u32 %v297, 65535
    %v302 = vshrl.u32 %v297, 16
    %v303 = vmul.u32 %v299, %v301
    %v304 = vmul.u32 %v299, %v302
    %v305 = vmul.u32 %v300, %v301
    %v306 = vmul.u32 %v300, %v302
    %v307 = vshll.u32 %v304, 16
    %v308 = vshrl.u32 %v304, 16
    %v309 = vshll.u32 %v305, 16
    %v310 = vshrl.u32 %v305, 16
    %vm311 = vc.u32 %v303, %v307
    %v312 = vsel %vm311, 1, 0
    %v313 = vadd.s32 %v303, %v307
    %v314 = vadd.s32 %v306, %v312
    %vm315 = vc.u32 %v313, %v309
    %v316 = vsel %vm315, 1, 0
    %v317 = vadd.s32 %v313, %v309
    %v318 = vadd.s32 %v314, %v316
    %v319 = vadd.s32 %v318, %v308
    %v320 = vadd.s32 %v319, %v310
    %v321 = vand.u32 %v298, 65535
    %v322 = vshrl.u32 %v298, 16
    %v323 = vand.u32 %v293, 65535
    %v324 = vshrl.u32 %v293, 16
    %v325 = vmul.u32 %v321, %v323
    %v326 = vmul.u32 %v321, %v324
    %v327 = vmul.u32 %v322, %v323
    %v328 = vmul.u32 %v322, %v324
    %v329 = vshll.u32 %v326, 16
    %v330 = vshrl.u32 %v326, 16
    %v331 = vshll.u32 %v327, 16
    %v332 = vshrl.u32 %v327, 16
    %vm333 = vc.u32 %v325, %v329
    %v334 = vsel %vm333, 1, 0
    %v335 = vadd.s32 %v325, %v329
    %v336 = vadd.s32 %v328, %v334
    %vm337 = vc.u32 %v335, %v331
    %v338 = vsel %vm337, 1, 0
    %v339 = vadd.s32 %v335, %v331
    %v340 = vadd.s32 %v336, %v338
    %v341 = vadd.s32 %v340, %v330
    %v342 = vadd.s32 %v341, %v332
    %v343 = vmul.u32 %v298, %v289
    %v344 = vadd.s32 %v320, %v339
    %vm345 = vc.u32 %v320, %v339
    %v346 = vadd.s32 %v342, 1
    %v347 = vsel %vm345, %v346, %v342
    %v348 = vadd.s32 %v343, %v347
    %v349 = vadd.s32 %v348, 536870912
    %v350 = vshrl.u32 %v349, 30
    %v351 = vshll.u32 %v350, 30
    %v352 = vsub.s32 %v348, %v351
    %vm353 = vcmp.lt.s32.totalorder %v352, 0
    %v354 = vsub.s32 0, %v352
    %v355 = vsel %vm353, %v354, %v352
    %v356 = vclz %v355
    %v357 = vsub.s32 %v356, 2
    %vm358 = vcmp.gt.s32.totalorder 0, %v357
    %v359 = vsel %vm358, 0, %v357
    %v360 = vsub.s32 32, %v359
    %v361 = vshll.u32 %v352, %v359
    %v362 = vshrl.u32 %v344, %v360
    %v363 = vor.u32 %v361, %v362
    %v364 = vsub.s32 4294967266, %v359
    %v365 = vadd.s32 %v364, 127
    %v366 = vshll.u32 %v365, 23
    %v367 = vor.u32 4788187, %v366
    %v368 = vand.u32 2147483647, %v367
    %v370 = vcvt.s32.f32 %v363
    %v371 = vmul.f32 %v370, %v368
    %v372 = vxor.u32 %v371, 2147483648
    %v373 = vsel %vm252, %v372, %v371
    %v374 = vsub.s32 4, %v350
    %v375 = vsel %vm252, %v374, %v350
    %v376 = vsel %vm251, %v249, %v373
    %v377 = vsel %vm251, 0, %v375
    %v378 = vmul.f32 %v376, %v376
    %v379 = vmul.f32 %v378, -0.001358992
    %v380 = vadd.f32 %v379, 0.041655596
    %v381 = vmul.f32 %v378, %v380
    %v382 = vadd.f32 %v381, -0.4999988
    %v383 = vmul.f32 %v378, %v382
    %v384 = vadd.f32 1.0, %v383
    %v385 = vmul.f32 %v376, %v376
    %v386 = vmul.f32 %v385, -0.00019511016
    %v387 = vadd.f32 %v386, 0.008332121
    %v388 = vmul.f32 %v385, %v387
    %v389 = vadd.f32 %v388, -0.16666654
    %v390 = vmul.f32 %v385, %v389
    %v391 = vadd.f32 %v390, 1.0
    %v392 = vmul.f32 %v391, %v376
    %vm393 = vweird.f32 %v249
    %v394 = vadd.s32 %v377, 3
    %v395 = vand.u32 %v394, 3
    %vm396 = vcmp.lt.s32.totalorder %v395, 2
    %vm397 = vcmp.eq.s32.totalorder %v395, 0
    %v398 = vxor.u32 %v392, 2147483648
    %v399 = vsel %vm397, %v384, %v398
    %vm400 = vcmp.eq.s32.totalorder %v395, 2
    %v401 = vxor.u32 %v384, 2147483648
    %v402 = vsel %vm400, %v401, %v392
    %v403 = vsel %vm396, %v399, %v402
    %v404 = vsel %vm393, nan, %v403
    %v405 = vand.u32 2147483647, %v249
    %vm406 = vcmp.le.f32.partialorder %v405, 0.7853982
    %vm407 = vcmp.lt.s32.totalorder %v249, 0
    %v408 = vand.u32 %v249, 2139095040
    %v409 = vshrl.u32 %v408, 23
    %v410 = vsub.s32 %v409, 127
    %v411 = vand.u32 2147483647, %v249
    %v412 = vand.u32 %v411, 8388607
    %v413 = vor.u32 %v412, 8388608
    %v414 = vsub.s32 0, %v413
    %v415 = vadd.s32 %v410, 1
    %vm416 = vcmp.gt.s32.totalorder %v415, 0
    %v417 = vsel %vm416, %v415, 0
    %v418 = vshrl.u32 %v417, 5
    %v419 = vand.u32 %v417, 31
    %v420 = vsub.s32 32, %v419
    %v421 = vshrl.u32 683565275, %v420
    %v422 = vshll.u32 683565275, %v419
    %v423 = vshrl.u32 2475754826, %v420
    %v424 = vor.u32 %v422, %v423
    %v425 = vshll.u32 2475754826, %v419
    %v426 = vshrl.u32 2131351028, %v420
    %v427 = vor.u32 %v425, %v426
    %v428 = vshll.u32 2131351028, %v419
    %v429 = vshrl.u32 2102212464, %v420
    %v430 = vor.u32 %v428, %v429
    %v431 = vshll.u32 2102212464, %v419
    %v432 = vshrl.u32 920167782, %v420
    %v433 = vor.u32 %v431, %v432
    %v434 = vshll.u32 920167782, %v419
    %v435 = vshrl.u32 1326507024, %v420
    %v436 = vor.u32 %v434, %v435
    %vm437 = vcmp.lt.s32.totalorder %v418, 1
    %vm438 = vcmp.lt.s32.totalorder %v418, 2
    %vm439 = vcmp.lt.s32.totalorder %v418, 3
    %vm440 = vcmp.lt.s32.totalorder %v418, 4
    %v441 = vsel %vm437, %v421, %v424
    %v442 = vsel %vm440, %v430, 2102212464
    %v443 = vsel %vm439, %v427, %v442
    %v444 = vsel %vm438, %v441, %v443
    %v445 = vsel %vm437, %v424, %v427
    %v446 = vsel %vm440, %v433, 920167782
    %v447 = vsel %vm439, %v430, %v446
    %v448 = vsel %vm438, %v445, %v447
    %v449 = vsel %vm437, %v427, %v430
    %v450 = vsel %vm440, %v436, 1326507024
    %v451 = vsel %vm439, %v433, %v450
    %v452 = vsel %vm438, %v449, %v451
    %v453 = vshll.u32 %v413, 8
    %v454 = vand.u32 %v453, 65535
    %v455 = vshrl.u32 %v453, 16
    %v456 = vand.u32 %v452, 65535
    %v457 = vshrl.u32 %v452, 16
    %v458 = vmul.u32 %v454, %v456
    %v459 = vmul.u32 %v454, %v457
    %v460 = vmul.u32 %v455, %v456
    %v461 = vmul.u32 %v455, %v457
    %v462 = vshll.u32 %v459, 16
    %v463 = vshrl.u32 %v459, 16
    %v464 = vshll.u32 %v460, 16
    %v465 = vshrl.u32 %v460, 16
    %vm466 = vc.u32 %v458, %v462
    %v467 = vsel %vm466, 1, 0
    %v468 = vadd.s32 %v458, %v462
    %v469 = vadd.s32 %v461, %v467
    %vm470 = vc.u32 %v468, %v464
    %v471 = vsel %vm470, 1, 0
    %v472 = vadd.s32 %v468, %v464
    %v473 = vadd.s32 %v469, %v471
    %v474 = vadd.s32 %v473, %v463
    %v475 = vadd.s32 %v474, %v465
    %v476 = vand.u32 %v453, 65535
    %v477 = vshrl.u32 %v453, 16
    %v478 = vand.u32 %v448, 65535
    %v479 = vshrl.u32 %v448, 16
    %v480 = vmul.u32 %v476, %v478
    %v481 = vmul.u32 %v476, %v479
    %v482 = vmul.u32 %v477, %v478
    %v483 = vmul.u32 %v477, %v479
    %v484 = vshll.u32 %v481, 16
    %v485 = vshrl.u32 %v481, 16
    %v486 = vshll.u32 %v482, 16
    %v487 = vshrl.u32 %v482, 16
    %vm488 = vc.u32 %v480, %v484
    %v489 = vsel %vm488, 1, 0
    %v490 = vadd.s32 %v480, %v484
    %v491 = vadd.s32 %v483, %v489
    %vm492 = vc.u32 %v490, %v486
    %v493 = vsel %vm492, 1, 0
    %v494 = vadd.s32 %v490, %v486
    %v495 = vadd.s32 %v491, %v493
    %v496 = vadd.s32 %v495, %v485
    %v497 = vadd.s32 %v496, %v487
    %v498 = vmul.u32 %v453, %v444
    %v499 = vadd.s32 %v475, %v494
    %vm500 = vc.u32 %v475, %v494
    %v501 = vadd.s32 %v497, 1
    %v502 = vsel %vm500, %v501, %v497
    %v503 = vadd.s32 %v498, %v502
    %v504 = vadd.s32 %v503, 536870912
    %v505 = vshrl.u32 %v504, 30
    %v506 = vshll.u32 %v505, 30
    %v507 = vsub.s32 %v503, %v506
    %vm508 = vcmp.lt.s32.totalorder %v507, 0
    %v509 = vsub.s32 0, %v507
    %v510 = vsel %vm508, %v509, %v507
    %v511 = vclz %v510
    %v512 = vsub.s32 %v511, 2
    %vm513 = vcmp.gt.s32.totalorder 0, %v512
    %v514 = vsel %vm513, 0, %v512
    %v515 = vsub.s32 32, %v514
    %v516 = vshll.u32 %v507, %v514
    %v517 = vshrl.u32 %v499, %v515
    %v518 = vor.u32 %v516, %v517
    %v519 = vsub.s32 4294967266, %v514
    %v520 = vadd.s32 %v519, 127
    %v521 = vshll.u32 %v520, 23
    %v522 = vor.u32 4788187, %v521
    %v523 = vand.u32 2147483647, %v522
    %v525 = vcvt.s32.f32 %v518
    %v526 = vmul.f32 %v525, %v523
    %v527 = vxor.u32 %v526, 2147483648
    %v528 = vsel %vm407, %v527, %v526
    %v529 = vsub.s32 4, %v505
    %v530 = vsel %vm407, %v529, %v505
    %v531 = vsel %vm406, %v249, %v528
    %v532 = vsel %vm406, 0, %v530
    %v533 = vmul.f32 %v531, %v531
    %v534 = vmul.f32 %v533, -0.001358992
    %v535 = vadd.f32 %v534, 0.041655596
    %v536 = vmul.f32 %v533, %v535
    %v537 = vadd.f32 %v536, -0.4999988
    %v538 = vmul.f32 %v533, %v537
    %v539 = vadd.f32 1.0, %v538
    %v540 = vmul.f32 %v531, %v531
    %v541 = vmul.f32 %v540, -0.00019511016
    %v542 = vadd.f32 %v541, 0.008332121
    %v543 = vmul.f32 %v540, %v542
    %v544 = vadd.f32 %v543, -0.16666654
    %v545 = vmul.f32 %v540, %v544
    %v546 = vadd.f32 %v545, 1.0
    %v547 = vmul.f32 %v546, %v531
    %vm548 = vweird.f32 %v249
    %v549 = vand.u32 %v532, 3
    %vm550 = vcmp.lt.s32.totalorder %v549, 2
    %vm551 = vcmp.eq.s32.totalorder %v549, 0
    %v552 = vxor.u32 %v547, 2147483648
    %v553 = vsel %vm551, %v539, %v552
    %vm554 = vcmp.eq.s32.totalorder %v549, 2
    %v555 = vxor.u32 %v539, 2147483648
    %v556 = vsel %vm554, %v555, %v547
    %v557 = vsel %vm550, %v553, %v556
    %v558 = vsel %vm548, nan, %v557
    %v559 = vld [vmem:[#allocation11] sm:$0xff]
    %v560 = vld [vmem:[#allocation11 + $0x8] sm:$0xff]
    %v561 = vld [vmem:[#allocation11 + $0x10] sm:$0xff]
    %v562 = vld [vmem:[#allocation11 + $0x18] sm:$0xff]
    %v563 = vld [vmem:[#allocation11 + $0x20] sm:$0xff]
    %v564 = vld [vmem:[#allocation11 + $0x28] sm:$0xff]
    %v565 = vld [vmem:[#allocation11 + $0x30] sm:$0xff]
    %v566 = vld [vmem:[#allocation11 + $0x38] sm:$0xff]
    %v567 = vld [vmem:[#allocation11 + $0x40] sm:$0xff]
    %v568 = vld [vmem:[#allocation11 + $0x48] sm:$0xff]
    %v569 = vld [vmem:[#allocation11 + $0x50] sm:$0xff]
    %v570 = vld [vmem:[#allocation11 + $0x58] sm:$0xff]
    %v571 = vld [vmem:[#allocation11 + $0x60] sm:$0xff]
    %v572 = vld [vmem:[#allocation11 + $0x68] sm:$0xff]
    %v573 = vld [vmem:[#allocation11 + $0x70] sm:$0xff]
    %v574 = vld [vmem:[#allocation11 + $0x78] sm:$0xff]
    %v575 = vld [vmem:[#allocation13] sm:$0xff]
    %v576 = vld [vmem:[#allocation13 + $0x8] sm:$0xff]
    %v577 = vld [vmem:[#allocation13 + $0x10] sm:$0xff]
    %v578 = vld [vmem:[#allocation13 + $0x18] sm:$0xff]
    %v579 = vld [vmem:[#allocation13 + $0x20] sm:$0xff]
    %v580 = vld [vmem:[#allocation13 + $0x28] sm:$0xff]
    %v581 = vld [vmem:[#allocation13 + $0x30] sm:$0xff]
    %v582 = vld [vmem:[#allocation13 + $0x38] sm:$0xff]
    %v583 = vld [vmem:[#allocation13 + $0x40] sm:$0xff]
    %v584 = vld [vmem:[#allocation13 + $0x48] sm:$0xff]
    %v585 = vld [vmem:[#allocation13 + $0x50] sm:$0xff]
    %v586 = vld [vmem:[#allocation13 + $0x58] sm:$0xff]
    %v587 = vld [vmem:[#allocation13 + $0x60] sm:$0xff]
    %v588 = vld [vmem:[#allocation13 + $0x68] sm:$0xff]
    %v589 = vld [vmem:[#allocation13 + $0x70] sm:$0xff]
    %v590 = vld [vmem:[#allocation13 + $0x78] sm:$0xff]
    %vm591 = vcmask 523264
    %v593 = vsel %vm591, %v558, 0
    %595 = vmatpush.msra.mxu0 0.0
    %596 = vmatpush.msra.mxu0 0.0
    %597 = vmatpush.msra.mxu0 0.0
    %598 = vmatpush.msra.mxu0 0.0
    %599 = vmatpush.msra.mxu0 0.0
    %600 = vmatpush.msra.mxu0 0.0
    %601 = vmatpush.msra.mxu0 0.0
    %602 = vmatpush.msra.mxu0 0.0
    %603 = vmatpush.msra.mxu0 %v589
    %604 = vmatpush.msra.mxu0 %v587
    %605 = vmatpush.msra.mxu0 %v585
    %606 = vmatpush.msra.mxu0 %v583
    %607 = vmatpush.msra.mxu0 %v581
    %608 = vmatpush.msra.mxu0 %v579
    %609 = vmatpush.msra.mxu0 %v577
    %610 = vmatpush.msra.mxu0 %v575
    %611 = vmatmul.f32.gmra.mxu0 %v593
    %v612 = vpop.f32.mrf.mxu0
    %v613 = vadd.f32 0.0, %v612
    %614 = vdwg.mxu0
    %615 = vmatpush.msra.mxu0 0.0
    %616 = vmatpush.msra.mxu0 0.0
    %617 = vmatpush.msra.mxu0 0.0
    %618 = vmatpush.msra.mxu0 0.0
    %619 = vmatpush.msra.mxu0 0.0
    %620 = vmatpush.msra.mxu0 0.0
    %621 = vmatpush.msra.mxu0 0.0
    %622 = vmatpush.msra.mxu0 0.0
    %623 = vmatpush.msra.mxu0 %v590
    %624 = vmatpush.msra.mxu0 %v588
    %625 = vmatpush.msra.mxu0 %v586
    %626 = vmatpush.msra.mxu0 %v584
    %627 = vmatpush.msra.mxu0 %v582
    %628 = vmatpush.msra.mxu0 %v580
    %629 = vmatpush.msra.mxu0 %v578
    %630 = vmatpush.msra.mxu0 %v576
    %631 = vmatmul.f32.gmra.mxu0 %v593
    %v632 = vpop.f32.mrf.mxu0
    %v633 = vadd.f32 0.0, %v632
    %634 = vdwg.mxu0
    %v636 = vsel %vm591, %v404, 0
    %638 = vmatpush.msra.mxu0 0.0
    %639 = vmatpush.msra.mxu0 0.0
    %640 = vmatpush.msra.mxu0 0.0
    %641 = vmatpush.msra.mxu0 0.0
    %642 = vmatpush.msra.mxu0 0.0
    %643 = vmatpush.msra.mxu0 0.0
    %644 = vmatpush.msra.mxu0 0.0
    %645 = vmatpush.msra.mxu0 0.0
    %646 = vmatpush.msra.mxu0 %v573
    %647 = vmatpush.msra.mxu0 %v571
    %648 = vmatpush.msra.mxu0 %v569
    %649 = vmatpush.msra.mxu0 %v567
    %650 = vmatpush.msra.mxu0 %v565
    %651 = vmatpush.msra.mxu0 %v563
    %652 = vmatpush.msra.mxu0 %v561
    %653 = vmatpush.msra.mxu0 %v559
    %654 = vmatmul.f32.gmra.mxu0 %v636
    %v655 = vpop.f32.mrf.mxu0
    %v656 = vadd.f32 %v613, %v655
    %657 = vdwg.mxu0
    %658 = vmatpush.msra.mxu0 0.0
    %659 = vmatpush.msra.mxu0 0.0
    %660 = vmatpush.msra.mxu0 0.0
    %661 = vmatpush.msra.mxu0 0.0
    %662 = vmatpush.msra.mxu0 0.0
    %663 = vmatpush.msra.mxu0 0.0
    %664 = vmatpush.msra.mxu0 0.0
    %665 = vmatpush.msra.mxu0 0.0
    %666 = vmatpush.msra.mxu0 %v574
    %667 = vmatpush.msra.mxu0 %v572
    %668 = vmatpush.msra.mxu0 %v570
    %669 = vmatpush.msra.mxu0 %v568
    %670 = vmatpush.msra.mxu0 %v566
    %671 = vmatpush.msra.mxu0 %v564
    %672 = vmatpush.msra.mxu0 %v562
    %673 = vmatpush.msra.mxu0 %v560
    %674 = vmatmul.f32.gmra.mxu0 %v636
    %v675 = vpop.f32.mrf.mxu0
    %v676 = vadd.f32 %v633, %v675
    %677 = vdwg.mxu0
    %v678 = vld [vmem:[%s10] sm:$0x3]
    %v680 = vperm.slane %v678, 0
    %v681 = vperm.slane %v678, 1
    %v684 = vadd.f32 %v656, %v680
    %v685 = vadd.f32 %v676, %v681
    %v686 = vmul.f32 %v684, 0.5
    %v687 = vmul.f32 %v685, 0.5
    %v688 = vmul.f32 %v684, 0.044715
    %v689 = vmul.f32 %v685, 0.044715
    %v690 = vmul.f32 %v688, %v684
    %v691 = vmul.f32 %v689, %v685
    %v692 = vmul.f32 %v690, %v684
    %v693 = vmul.f32 %v691, %v685
    %v694 = vadd.f32 %v684, %v692
    %v695 = vadd.f32 %v685, %v693
    %v696 = vmul.f32 %v694, 0.7978846
    %v697 = vmul.f32 %v695, 0.7978846
    %v698 = vtanh.pop %v696
    %v699 = vtanh.pop %v697
    %v700 = vadd.f32 %v698, 1.0
    %v701 = vadd.f32 %v699, 1.0
    %v702 = vmul.f32 %v686, %v700
    %v703 = vmul.f32 %v687, %v701
    %v704 = vld [vmem:[#allocation14] sm:$0xff]
    %v705 = vld [vmem:[#allocation14 + $0x8] sm:$0xff]
    %v706 = vld [vmem:[#allocation14 + $0x10] sm:$0xff]
    %v707 = vld [vmem:[#allocation14 + $0x18] sm:$0xff]
    %v708 = vld [vmem:[#allocation14 + $0x20] sm:$0xff]
    %v709 = vld [vmem:[#allocation14 + $0x28] sm:$0xff]
    %v710 = vld [vmem:[#allocation14 + $0x30] sm:$0xff]
    %v711 = vld [vmem:[#allocation14 + $0x38] sm:$0xff]
    %v712 = vld [vmem:[#allocation14 + $0x40] sm:$0xff]
    %v713 = vld [vmem:[#allocation14 + $0x48] sm:$0xff]
    %v714 = vld [vmem:[#allocation14 + $0x50] sm:$0xff]
    %v715 = vld [vmem:[#allocation14 + $0x58] sm:$0xff]
    %v716 = vld [vmem:[#allocation14 + $0x60] sm:$0xff]
    %v717 = vld [vmem:[#allocation14 + $0x68] sm:$0xff]
    %v718 = vld [vmem:[#allocation14 + $0x70] sm:$0xff]
    %v719 = vld [vmem:[#allocation14 + $0x78] sm:$0xff]
    %v720 = vld [vmem:[#allocation14 + $0x80] sm:$0xff]
    %v721 = vld [vmem:[#allocation14 + $0x88] sm:$0xff]
    %v722 = vld [vmem:[#allocation14 + $0x90] sm:$0xff]
    %v723 = vld [vmem:[#allocation14 + $0x98] sm:$0xff]
    %v724 = vld [vmem:[#allocation14 + $0xa0] sm:$0xff]
    %v725 = vld [vmem:[#allocation14 + $0xa8] sm:$0xff]
    %v726 = vld [vmem:[#allocation14 + $0xb0] sm:$0xff]
    %v727 = vld [vmem:[#allocation14 + $0xb8] sm:$0xff]
    %v728 = vld [vmem:[#allocation14 + $0xc0] sm:$0xff]
    %v729 = vld [vmem:[#allocation14 + $0xc8] sm:$0xff]
    %v730 = vld [vmem:[#allocation14 + $0xd0] sm:$0xff]
    %v731 = vld [vmem:[#allocation14 + $0xd8] sm:$0xff]
    %v732 = vld [vmem:[#allocation14 + $0xe0] sm:$0xff]
    %v733 = vld [vmem:[#allocation14 + $0xe8] sm:$0xff]
    %v734 = vld [vmem:[#allocation14 + $0xf0] sm:$0xff]
    %v735 = vld [vmem:[#allocation14 + $0xf8] sm:$0xff]
    %v736 = vld [vmem:[%s12] sm:$0x1]
    %v738 = vperm.slane %v736, 0
    %740 = vmatpush.msra.mxu0 %v719
    %741 = vmatpush.msra.mxu0 %v718
    %742 = vmatpush.msra.mxu0 %v717
    %743 = vmatpush.msra.mxu0 %v716
    %744 = vmatpush.msra.mxu0 %v715
    %745 = vmatpush.msra.mxu0 %v714
    %746 = vmatpush.msra.mxu0 %v713
    %747 = vmatpush.msra.mxu0 %v712
    %748 = vmatpush.msra.mxu0 %v711
    %749 = vmatpush.msra.mxu0 %v710
    %750 = vmatpush.msra.mxu0 %v709
    %751 = vmatpush.msra.mxu0 %v708
    %752 = vmatpush.msra.mxu0 %v707
    %753 = vmatpush.msra.mxu0 %v706
    %754 = vmatpush.msra.mxu0 %v705
    %755 = vmatpush.msra.mxu0 %v704
    %756 = vmatmul.f32.gmra.mxu0 %v702
    %v757 = vpop.f32.mrf.mxu0
    %v758 = vadd.f32 %v738, %v757
    %759 = vdwg.mxu0
    %760 = vmatpush.msra.mxu0 %v735
    %761 = vmatpush.msra.mxu0 %v734
    %762 = vmatpush.msra.mxu0 %v733
    %763 = vmatpush.msra.mxu0 %v732
    %764 = vmatpush.msra.mxu0 %v731
    %765 = vmatpush.msra.mxu0 %v730
    %766 = vmatpush.msra.mxu0 %v729
    %767 = vmatpush.msra.mxu0 %v728
    %768 = vmatpush.msra.mxu0 %v727
    %769 = vmatpush.msra.mxu0 %v726
    %770 = vmatpush.msra.mxu0 %v725
    %771 = vmatpush.msra.mxu0 %v724
    %772 = vmatpush.msra.mxu0 %v723
    %773 = vmatpush.msra.mxu0 %v722
    %774 = vmatpush.msra.mxu0 %v721
    %775 = vmatpush.msra.mxu0 %v720
    %776 = vmatmul.f32.gmra.mxu0 %v703
    %v777 = vpop.f32.mrf.mxu0
    %v778 = vadd.f32 %v758, %v777
    %779 = vdwg.mxu0
    %v780 = vld [vmem:[#allocation7] sm:$0xff]
    %v781 = vld [vmem:[#allocation10] sm:$0xff]
    %v782 = vld [vmem:[#allocation10 + $0x8] sm:$0xff]
    %v783 = vld [vmem:[#allocation10 + $0x10] sm:$0xff]
    %v784 = vld [vmem:[#allocation10 + $0x18] sm:$0xff]
    %v785 = vld [vmem:[#allocation10 + $0x20] sm:$0xff]
    %v786 = vld [vmem:[#allocation10 + $0x28] sm:$0xff]
    %v787 = vld [vmem:[#allocation10 + $0x30] sm:$0xff]
    %v788 = vld [vmem:[#allocation10 + $0x38] sm:$0xff]
    %v789 = vld [vmem:[#allocation10 + $0x40] sm:$0xff]
    %v790 = vld [vmem:[#allocation10 + $0x48] sm:$0xff]
    %v791 = vld [vmem:[#allocation10 + $0x50] sm:$0xff]
    %v792 = vld [vmem:[#allocation10 + $0x58] sm:$0xff]
    %v793 = vld [vmem:[#allocation10 + $0x60] sm:$0xff]
    %v794 = vld [vmem:[#allocation10 + $0x68] sm:$0xff]
    %v795 = vld [vmem:[#allocation10 + $0x70] sm:$0xff]
    %v796 = vld [vmem:[#allocation10 + $0x78] sm:$0xff]
    %v797 = vld [vmem:[%s7] sm:$0x1]
    %v799 = vperm.slane %v797, 0
    %801 = vmatpush.msra.mxu0 %v796
    %802 = vmatpush.msra.mxu0 %v795
    %803 = vmatpush.msra.mxu0 %v794
    %804 = vmatpush.msra.mxu0 %v793
    %805 = vmatpush.msra.mxu0 %v792
    %806 = vmatpush.msra.mxu0 %v791
    %807 = vmatpush.msra.mxu0 %v790
    %808 = vmatpush.msra.mxu0 %v789
    %809 = vmatpush.msra.mxu0 %v788
    %810 = vmatpush.msra.mxu0 %v787
    %811 = vmatpush.msra.mxu0 %v786
    %812 = vmatpush.msra.mxu0 %v785
    %813 = vmatpush.msra.mxu0 %v784
    %814 = vmatpush.msra.mxu0 %v783
    %815 = vmatpush.msra.mxu0 %v782
    %816 = vmatpush.msra.mxu0 %v781
    %817 = vmatmul.f32.gmra.mxu0 %v780
    %v818 = vpop.f32.mrf.mxu0
    %v819 = vadd.f32 %v799, %v818
    %820 = vdwg.mxu0
    %v821 = vld [vmem:[#allocation8] sm:$0xff]
    %822 = vmatpush.msra.mxu0 %v796
    %823 = vmatpush.msra.mxu0 %v795
    %824 = vmatpush.msra.mxu0 %v794
    %825 = vmatpush.msra.mxu0 %v793
    %826 = vmatpush.msra.mxu0 %v792
    %827 = vmatpush.msra.mxu0 %v791
    %828 = vmatpush.msra.mxu0 %v790
    %829 = vmatpush.msra.mxu0 %v789
    %830 = vmatpush.msra.mxu0 %v788
    %831 = vmatpush.msra.mxu0 %v787
    %832 = vmatpush.msra.mxu0 %v786
    %833 = vmatpush.msra.mxu0 %v785
    %834 = vmatpush.msra.mxu0 %v784
    %835 = vmatpush.msra.mxu0 %v783
    %836 = vmatpush.msra.mxu0 %v782
    %837 = vmatpush.msra.mxu0 %v781
    %838 = vmatmul.f32.gmra.mxu0 %v821
    %v839 = vpop.f32.mrf.mxu0
    %v840 = vadd.f32 %v799, %v839
    %841 = vdwg.mxu0
    %v842 = vmul.f32 %v819, %v840
    %843 = vadd.xlane.f32.xlu0 %v842
    %v844 = vpop.xlane.xlu0 %843
    %v845 = vmul.f32 %v819, %v819
    %846 = vadd.xlane.f32.xlu0 %v845
    %v847 = vpop.xlane.xlu0 %846
    %v848 = vrsqrt.pop %v847
    %v849 = vmul.f32 %v848, %v847
    %v850 = vmul.f32 %v849, %v848
    %v851 = vmul.f32 0.5, %v850
    %v852 = vsub.f32 1.5, %v851
    %v853 = vmul.f32 %v848, %v852
    %v854 = vmul.f32 %v847, %v853
    %vm855 = vcmp.eq.f32.partialorder %v847, inf
    %v856 = vsel %vm855, %v847, %v854
    %vm857 = vcmp.eq.f32.partialorder %v847, 0.0
    %v858 = vand.u32 %v847, 2147483648
    %v859 = vsel %vm857, %v858, %v856
    %v860 = vmul.f32 %v840, %v840
    %861 = vadd.xlane.f32.xlu0 %v860
    %v862 = vpop.xlane.xlu0 %861
    %v863 = vrsqrt.pop %v862
    %v864 = vmul.f32 %v863, %v862
    %v865 = vmul.f32 %v864, %v863
    %v866 = vmul.f32 0.5, %v865
    %v867 = vsub.f32 1.5, %v866
    %v868 = vmul.f32 %v863, %v867
    %v869 = vmul.f32 %v862, %v868
    %vm870 = vcmp.eq.f32.partialorder %v862, inf
    %v871 = vsel %vm870, %v862, %v869
    %vm872 = vcmp.eq.f32.partialorder %v862, 0.0
    %v873 = vand.u32 %v862, 2147483648
    %v874 = vsel %vm872, %v873, %v871
    %v875 = vmul.f32 %v859, %v874
    %v876 = vmax.f32 %v875, 1e-08
    %v877 = vrcp.pop %v876
    %v878 = vmul.f32 %v876, %v877
    %v879 = vsub.f32 1.0, %v878
    %v880 = vmul.f32 %v877, %v879
    %v881 = vadd.f32 %v877, %v880
    %vm882 = vweird.f32 %v876
    %vm883 = vweird.f32 %v877
    %vm884 = vmor %vm882, %vm883
    %v885 = vsel %vm884, %v877, %v881
    %v886 = vand.u32 2147483647, %v876
    %vm887 = vcmp.eq.f32.partialorder %v886, 8.507059e+37
    %v888 = vand.u32 %v876, 2147483648
    %v889 = vor.u32 1.1754944e-38, %v888
    %v890 = vsel %vm887, %v889, %v885
    %v891 = vmul.f32 %v844, %v890
    %v892 = vtanh.pop %v891
    %v893 = vadd.f32 %v892, 1.0
    %v894 = vmul.f32 %v893, 0.5
    %v895 = vmul.f32 %v819, %v894
    %v896 = vsub.f32 1.0, %v894
    %v897 = vmul.f32 %v840, %v896
    %v898 = vadd.f32 %v895, %v897
    %v899 = vld [vmem:[%s2] sm:$0xff]
    %v900 = vld [vmem:[#allocation16] sm:$0xff]
    %v901 = vld [vmem:[#allocation16 + $0x8] sm:$0xff]
    %v902 = vld [vmem:[#allocation16 + $0x10] sm:$0xff]
    %v903 = vld [vmem:[#allocation16 + $0x18] sm:$0xff]
    %v904 = vld [vmem:[#allocation16 + $0x20] sm:$0xff]
    %v905 = vld [vmem:[#allocation16 + $0x28] sm:$0xff]
    %v906 = vld [vmem:[#allocation16 + $0x30] sm:$0xff]
    %v907 = vld [vmem:[#allocation16 + $0x38] sm:$0xff]
    %v908 = vld [vmem:[#allocation16 + $0x40] sm:$0xff]
    %v909 = vld [vmem:[#allocation16 + $0x48] sm:$0xff]
    %v910 = vld [vmem:[#allocation16 + $0x50] sm:$0xff]
    %v911 = vld [vmem:[#allocation16 + $0x58] sm:$0xff]
    %v912 = vld [vmem:[#allocation16 + $0x60] sm:$0xff]
    %v913 = vld [vmem:[#allocation16 + $0x68] sm:$0xff]
    %v914 = vld [vmem:[#allocation16 + $0x70] sm:$0xff]
    %v915 = vld [vmem:[#allocation16 + $0x78] sm:$0xff]
    %v916 = vld [vmem:[#allocation5] sm:$0xff]
    %v917 = vld [vmem:[#allocation17] sm:$0xff]
    %v918 = vld [vmem:[#allocation17 + $0x8] sm:$0xff]
    %v919 = vld [vmem:[#allocation17 + $0x10] sm:$0xff]
    %v920 = vld [vmem:[#allocation17 + $0x18] sm:$0xff]
    %v921 = vld [vmem:[#allocation17 + $0x20] sm:$0xff]
    %v922 = vld [vmem:[#allocation17 + $0x28] sm:$0xff]
    %v923 = vld [vmem:[#allocation17 + $0x30] sm:$0xff]
    %v924 = vld [vmem:[#allocation17 + $0x38] sm:$0xff]
    %v925 = vld [vmem:[#allocation17 + $0x40] sm:$0xff]
    %v926 = vld [vmem:[#allocation17 + $0x48] sm:$0xff]
    %v927 = vld [vmem:[#allocation17 + $0x50] sm:$0xff]
    %v928 = vld [vmem:[#allocation17 + $0x58] sm:$0xff]
    %v929 = vld [vmem:[#allocation17 + $0x60] sm:$0xff]
    %v930 = vld [vmem:[#allocation17 + $0x68] sm:$0xff]
    %v931 = vld [vmem:[#allocation17 + $0x70] sm:$0xff]
    %v932 = vld [vmem:[#allocation17 + $0x78] sm:$0xff]
    %933 = vmatpush.msra.mxu0 %v932
    %934 = vmatpush.msra.mxu0 %v931
    %935 = vmatpush.msra.mxu0 %v930
    %936 = vmatpush.msra.mxu0 %v929
    %937 = vmatpush.msra.mxu0 %v928
    %938 = vmatpush.msra.mxu0 %v927
    %939 = vmatpush.msra.mxu0 %v926
    %940 = vmatpush.msra.mxu0 %v925
    %941 = vmatpush.msra.mxu0 %v924
    %942 = vmatpush.msra.mxu0 %v923
    %943 = vmatpush.msra.mxu0 %v922
    %944 = vmatpush.msra.mxu0 %v921
    %945 = vmatpush.msra.mxu0 %v920
    %946 = vmatpush.msra.mxu0 %v919
    %947 = vmatpush.msra.mxu0 %v918
    %948 = vmatpush.msra.mxu0 %v917
    %949 = vmatmul.f32.gmra.mxu0 %v916
    %v950 = vpop.f32.mrf.mxu0
    %v951 = vadd.f32 0.0, %v950
    %952 = vdwg.mxu0
    %953 = vmatpush.msra.mxu0 %v915
    %954 = vmatpush.msra.mxu0 %v914
    %955 = vmatpush.msra.mxu0 %v913
    %956 = vmatpush.msra.mxu0 %v912
    %957 = vmatpush.msra.mxu0 %v911
    %958 = vmatpush.msra.mxu0 %v910
    %959 = vmatpush.msra.mxu0 %v909
    %960 = vmatpush.msra.mxu0 %v908
    %961 = vmatpush.msra.mxu0 %v907
    %962 = vmatpush.msra.mxu0 %v906
    %963 = vmatpush.msra.mxu0 %v905
    %964 = vmatpush.msra.mxu0 %v904
    %965 = vmatpush.msra.mxu0 %v903
    %966 = vmatpush.msra.mxu0 %v902
    %967 = vmatpush.msra.mxu0 %v901
    %968 = vmatpush.msra.mxu0 %v900
    %969 = vmatmul.f32.gmra.mxu0 %v899
    %v970 = vpop.f32.mrf.mxu0
    %v971 = vadd.f32 %v951, %v970
    %972 = vdwg.mxu0
    %v973 = vld [vmem:[#allocation19] sm:$0xff]
    %v974 = vld [vmem:[#allocation19 + $0x8] sm:$0xff]
    %v975 = vld [vmem:[#allocation19 + $0x10] sm:$0xff]
    %v976 = vld [vmem:[#allocation19 + $0x18] sm:$0xff]
    %v977 = vld [vmem:[#allocation19 + $0x20] sm:$0xff]
    %v978 = vld [vmem:[#allocation19 + $0x28] sm:$0xff]
    %v979 = vld [vmem:[#allocation19 + $0x30] sm:$0xff]
    %v980 = vld [vmem:[#allocation19 + $0x38] sm:$0xff]
    %v981 = vld [vmem:[#allocation19 + $0x40] sm:$0xff]
    %v982 = vld [vmem:[#allocation19 + $0x48] sm:$0xff]
    %v983 = vld [vmem:[#allocation19 + $0x50] sm:$0xff]
    %v984 = vld [vmem:[#allocation19 + $0x58] sm:$0xff]
    %v985 = vld [vmem:[#allocation19 + $0x60] sm:$0xff]
    %v986 = vld [vmem:[#allocation19 + $0x68] sm:$0xff]
    %v987 = vld [vmem:[#allocation19 + $0x70] sm:$0xff]
    %v988 = vld [vmem:[#allocation19 + $0x78] sm:$0xff]
    %989 = vmatpush.msra.mxu0 %v988
    %990 = vmatpush.msra.mxu0 %v987
    %991 = vmatpush.msra.mxu0 %v986
    %992 = vmatpush.msra.mxu0 %v985
    %993 = vmatpush.msra.mxu0 %v984
    %994 = vmatpush.msra.mxu0 %v983
    %995 = vmatpush.msra.mxu0 %v982
    %996 = vmatpush.msra.mxu0 %v981
    %997 = vmatpush.msra.mxu0 %v980
    %998 = vmatpush.msra.mxu0 %v979
    %999 = vmatpush.msra.mxu0 %v978
    %1000 = vmatpush.msra.mxu0 %v977
    %1001 = vmatpush.msra.mxu0 %v976
    %1002 = vmatpush.msra.mxu0 %v975
    %1003 = vmatpush.msra.mxu0 %v974
    %1004 = vmatpush.msra.mxu0 %v973
    %1005 = vmatmul.f32.gmra.mxu0 %v778
    %v1006 = vpop.f32.mrf.mxu0
    %v1007 = vadd.f32 0.0, %v1006
    %1008 = vdwg.mxu0
    %v1009 = vadd.f32 %v971, %v1007
    %v1010 = vld [vmem:[#allocation20] sm:$0xff]
    %v1011 = vld [vmem:[#allocation20 + $0x8] sm:$0xff]
    %v1012 = vld [vmem:[#allocation20 + $0x10] sm:$0xff]
    %v1013 = vld [vmem:[#allocation20 + $0x18] sm:$0xff]
    %v1014 = vld [vmem:[#allocation20 + $0x20] sm:$0xff]
    %v1015 = vld [vmem:[#allocation20 + $0x28] sm:$0xff]
    %v1016 = vld [vmem:[#allocation20 + $0x30] sm:$0xff]
    %v1017 = vld [vmem:[#allocation20 + $0x38] sm:$0xff]
    %v1018 = vld [vmem:[#allocation20 + $0x40] sm:$0xff]
    %v1019 = vld [vmem:[#allocation20 + $0x48] sm:$0xff]
    %v1020 = vld [vmem:[#allocation20 + $0x50] sm:$0xff]
    %v1021 = vld [vmem:[#allocation20 + $0x58] sm:$0xff]
    %v1022 = vld [vmem:[#allocation20 + $0x60] sm:$0xff]
    %v1023 = vld [vmem:[#allocation20 + $0x68] sm:$0xff]
    %v1024 = vld [vmem:[#allocation20 + $0x70] sm:$0xff]
    %v1025 = vld [vmem:[#allocation20 + $0x78] sm:$0xff]
    %1026 = vmatpush.msra.mxu0 %v1025
    %1027 = vmatpush.msra.mxu0 %v1024
    %1028 = vmatpush.msra.mxu0 %v1023
    %1029 = vmatpush.msra.mxu0 %v1022
    %1030 = vmatpush.msra.mxu0 %v1021
    %1031 = vmatpush.msra.mxu0 %v1020
    %1032 = vmatpush.msra.mxu0 %v1019
    %1033 = vmatpush.msra.mxu0 %v1018
    %1034 = vmatpush.msra.mxu0 %v1017
    %1035 = vmatpush.msra.mxu0 %v1016
    %1036 = vmatpush.msra.mxu0 %v1015
    %1037 = vmatpush.msra.mxu0 %v1014
    %1038 = vmatpush.msra.mxu0 %v1013
    %1039 = vmatpush.msra.mxu0 %v1012
    %1040 = vmatpush.msra.mxu0 %v1011
    %1041 = vmatpush.msra.mxu0 %v1010
    %1042 = vmatmul.f32.gmra.mxu0 %v898
    %v1043 = vpop.f32.mrf.mxu0
    %v1044 = vadd.f32 0.0, %v1043
    %1045 = vdwg.mxu0
    %v1046 = vadd.f32 %v1009, %v1044
    %v1047 = vld [vmem:[%s17] sm:$0x1]
    %v1049 = vperm.slane %v1047, 0
    %v1051 = vadd.f32 %v1046, %v1049
    %1052 = vst [vmem:[#allocation22] sm:$0xff] %v1051
    // Predicated region
    $region122: #{tpu_custom_call.1} parent=1 // pred_check
      _
    $region123: #{tpu_custom_call.1} parent=1 // pred_check_branch
      %1054 = sbr.rel (0) target = $region125
    $region124: #{tpu_custom_call.1} parent=1 // pred_region
      %1056 = vsyncadd [#allocation4], 0
      %s1058 = sshll.u32 [#allocation22], 4
      %s1059 = int_to_ptr.vmem [resolvable:$true] %s1058
      %s1060 = sshll.u32 %s18, 4
      %s1061 = int_to_ptr.hbm [resolvable:$true] %s1060
      %1063 = dma.vmem_to_hbm [thread:$0]  %s1059, 128, %s1061, [#allocation4]
    $region125: #{tpu_custom_call.1} parent=1 // pred_fallthru
      _
    // Predicated region
    $region126: #{tpu_custom_call.1} parent=1 // pred_check
      _
    $region127: #{tpu_custom_call.1} parent=1 // pred_check_branch
      %1065 = sbr.rel (0) target = $region129
    $region128: #{tpu_custom_call.1} parent=1 // pred_region
      %1067 = dma.done [#allocation4], 128
    $region129: #{tpu_custom_call.1} parent=1 // pred_fallthru
      _
    %1068 = vsyncpa [#allocation3], 1
    %1069 = vsyncpa [#allocation6], 1
    %1070 = vsyncpa [#allocation9], 1
    %1071 = vsyncpa [#allocation12], 1
    %1072 = vsyncpa [#allocation15], 1
    %1073 = vsyncpa [#allocation18], 1
    %1074 = vsyncpa [#allocation21], 1
    %1075 = vsyncpa [#allocation4], 1

</llo_original>
